<compile_context>
chip_gen: v5e
topology: v5e:2x2
jax: 0.10.0
libtpu: 0.0.40
codegen_flags: <defaults>
</compile_context>

<pallas_src>
import functools

import jax
import jax.numpy as jnp
from jax.experimental import pallas as pl
from jax.experimental.pallas import tpu as pltpu


_TARGET_BLOCK_BYTES = 4 * 1024 * 1024   # per in/out block; ~4x live once double-buffered
_MIN_BLOCK_BYTES = 2 * 1024 * 1024      # don't shrink blocks below this just to add steps
_TARGET_GRID_STEPS = 4                  # enough steps to pipeline + feed both v7x TCs
_VMEM_LIMIT_BYTES = 48 * 1024 * 1024    # < v7x 64 MiB physical; plenty of headroom elsewhere


def _choose_blocks(b, c, h, w, s, itemsize):
    """Pick (c_block, tile_h) for one grid step.

    tile_h is a multiple of `step = s * native_sublane(dtype)` so the output block's
    second-minor dim (tile_h//s) matches the dtype's sublane tile (8/16/32 for
    32/16/8-bit); falls back to the full H (full-dim blocks are always legal) for
    tiny/odd shapes. Prefers the largest block under the VMEM budget, then shrinks
    tile_h so the grid has enough steps to pipeline / use both v7x cores.
    """
    step = s * max(8, 32 // itemsize)
    h_opts = [d for d in range(step, h + 1, step) if h % d == 0]
    if not h_opts:
        h_opts = [h]
    h_opts.sort(reverse=True)
    c_opts = sorted((d for d in range(1, c + 1) if c % d == 0), reverse=True)

    def blk_bytes(cb, th):
        return cb * th * w * itemsize

    # 1) Largest block under the budget: prefer full C, shrink H first, then C.
    c_blk, tile_h = c_opts[-1], h_opts[-1]
    found = False
    for cb in c_opts:
        for th in h_opts:
            if blk_bytes(cb, th) <= _TARGET_BLOCK_BYTES:
                c_blk, tile_h, found = cb, th, True
                break
        if found:
            break

    # 2) Guarantee enough grid steps (>=2 always; ~4 if blocks can stay >= 2 MiB).
    def steps(th):
        return b * (c // c_blk) * (h // th)

    for th in h_opts:
        if th >= tile_h:
            continue
        if steps(tile_h) >= _TARGET_GRID_STEPS:
            break
        if steps(tile_h) >= 2 and blk_bytes(c_blk, th) < _MIN_BLOCK_BYTES:
            break
        tile_h = th
    return c_blk, tile_h


@functools.lru_cache(maxsize=None)
def _xla_low_half_first() -> bool:
    """True iff lax.bitcast_convert_type packs element 0 of a 16-bit pair into the
    LOW half of the uint32 (little-endian memory order). Probed once, eagerly."""
    probe = jax.lax.bitcast_convert_type(
        jnp.array([[1, 0]], dtype=jnp.uint16), jnp.uint32)
    return int(jax.device_get(probe)[0]) == 1


def _contract_kernel(x_ref, o_ref, *, gain: int):
    """Generic path. x_ref: (c, tile_h, W); o_ref: (s*s, c, tile_h//s, W//s)."""
    s = gain
    c, th, w = x_ref.shape
    tho, two = th // s, w // s
    for s1 in range(s):
        # H de-interleave: sublane-strided read (native vld sublane stride);
        # the lane dim stays full-width and contiguous.
        v = x_ref[:, pl.ds(s1, tho, stride=s), :]                 # (c, tho, w)
        # W de-interleave: intrinsically cross-lane for 32-bit dtypes (no lane-
        # strided vld on TPU), so split the lane dim and extract each phase.
        v = v.reshape(c, tho, two, s)
        for s2 in range(s):
            o_ref[s1 * s + s2] = v[:, :, :, s2]                   # contiguous group slab


def _contract_kernel_packed16(x_ref, o_ref, *, out_dtype, low_half_first: bool):
    """16-bit dtype, gain=2: lane-local W de-interleave via u32 shift/mask (VPU only).

    x_ref: (c, tile_h, W//2) uint32 — each word packs two adjacent 16-bit W elements.
    o_ref: (4, c, tile_h//2, W//2) in the original 16-bit dtype.
    """
    c, th, wp = x_ref.shape
    tho = th // 2
    for s1 in range(2):
        # H de-interleave: sublane-strided read; lane dim (W/2 packed words) dense.
        u = x_ref[:, pl.ds(s1, tho, stride=2), :]                 # (c, tho, W//2) u32
        lo = pltpu.bitcast((u & 0xFFFF).astype(jnp.uint16), out_dtype)
        hi = pltpu.bitcast((u >> 16).astype(jnp.uint16), out_dtype)
        even, odd = (lo, hi) if low_half_first else (hi, lo)
        o_ref[2 * s1 + 0] = even                                  # W phase s2 = 0
        o_ref[2 * s1 + 1] = odd                                   # W phase s2 = 1


def contract(x: jax.Array, gain: int = 2) -> jax.Array:
    """Pallas TPU implementation of yolov5 Contract.forward (space-to-depth)."""
    b, c, h, w = x.shape
    s = int(gain)
    assert h % s == 0 and w % s == 0, "H and W must be divisible by gain"
    out_h, out_w = h // s, w // s

    itemsize = x.dtype.itemsize
    c_blk, tile_h = _choose_blocks(b, c, h, w, s, itemsize)
    grid = (b, c // c_blk, h // tile_h)

    def launch(kernel, x_in, w_in):
        y = pl.pallas_call(
            kernel,
            # Group-major output view; merging (s*s, C) back is a free reshape.
            out_shape=jax.ShapeDtypeStruct((b, s * s, c, out_h, out_w), x.dtype),
            grid=grid,
            in_specs=[
                pl.BlockSpec((None, c_blk, tile_h, w_in),
                             lambda bi, ci, hi: (bi, ci, hi, 0)),
            ],
            out_specs=pl.BlockSpec(
                (None, s * s, c_blk, tile_h // s, out_w),
                lambda bi, ci, hi: (bi, 0, ci, hi, 0)),
            compiler_params=pltpu.CompilerParams(
                # All grid axes are independent -> shard across v7x's 2 TensorCores.
                dimension_semantics=("parallel", "parallel", "parallel"),
                vmem_limit_bytes=_VMEM_LIMIT_BYTES,
            ),
        )(x_in)
        return y.reshape(b, c * s * s, out_h, out_w)

    # Lane-local fast path for 16-bit activations with gain=2 (bf16/fp16 YOLO Focus).
    if s == 2 and itemsize == 2:
        try:
            x_packed = jax.lax.bitcast_convert_type(      # free metadata bitcast in HBM
                x.reshape(b, c, h, w // 2, 2), jnp.uint32)
            kernel = functools.partial(
                _contract_kernel_packed16,
                out_dtype=x.dtype,
                low_half_first=_xla_low_half_first())
            return launch(kernel, x_packed, w // 2)
        except Exception:
            # Conservative guard: fall back to the generic (relayout-based)
            # W de-interleave if the packed path fails to lower on this backend.
            pass

    return launch(functools.partial(_contract_kernel, gain=s), x, w)


def _contract_ref(x: jax.Array, gain: int = 2) -> jax.Array:
    # pure-JAX reference mirroring the torch code exactly
    b, c, h, w = x.shape
    s = gain
    y = x.reshape(b, c, h // s, s, w // s, s)
    y = jnp.transpose(y, (0, 3, 5, 1, 2, 4))
    return y.reshape(b, c * s * s, h // s, w // s)


if __name__ == "__main__":
    key = jax.random.PRNGKey(0)
    # small shapes consistent with the module: batch=2, channels=4, spatial=16
    x = jax.random.normal(key, (2, 4, 16, 16), dtype=jnp.float32)

    out = jax.block_until_ready(contract(x, gain=2))
    ref = _contract_ref(x, gain=2)
    assert out.shape == (2, 16, 8, 8), out.shape
    assert out.dtype == x.dtype
    # pure data movement -> bit-exact
    assert bool(jnp.array_equal(out, ref)), "f32 Pallas Contract kernel mismatch"

    # Also exercise the lane-local packed path used for 16-bit activations.
    xb = x.astype(jnp.bfloat16)
    outb = jax.block_until_ready(contract(xb, gain=2))
    refb = _contract_ref(xb, gain=2)
    assert outb.shape == (2, 16, 8, 8) and outb.dtype == jnp.bfloat16
    assert bool(jnp.array_equal(outb, refb)), "bf16 Pallas Contract kernel mismatch"

    print("KERNEL_OK")
</pallas_src>

<mosaic_0001>
module attributes {stable_mosaic.version = 11 : i64} {
  func.func @_contract_kernel(%arg0: i32, %arg1: i32, %arg2: i32, %arg3: memref<1x4x16x16xf32, #tpu.memory_space<vmem>>, %arg4: memref<1x4x4x8x8xf32, #tpu.memory_space<vmem>>) attributes {dimension_semantics = [#tpu.dimension_semantics<parallel>, #tpu.dimension_semantics<parallel>, #tpu.dimension_semantics<parallel>], iteration_bounds = array<i64: 2, 1, 1>, scalar_prefetch = 0 : i64, scratch_operands = 0 : i64, tpu.core_type = #tpu.core_type<tc>, window_params = [{transform_indices = @transform_0, window_bounds = array<i64: 1, 4, 16, 16>}, {transform_indices = @transform_1, window_bounds = array<i64: 1, 4, 4, 8, 8>}]} {
    %c0 = arith.constant 0 : index
    %c0_0 = arith.constant 0 : index
    %c0_1 = arith.constant 0 : index
    %c0_2 = arith.constant 0 : index
    %0 = tpu.strided_load %arg3[%c0, %c0_0, %c0_1, %c0_2] {strides = array<i32: 1, 1, 2, 1>} : memref<1x4x16x16xf32, #tpu.memory_space<vmem>>, vector<1x4x8x16xf32>
    %1 = vector.shape_cast %0 : vector<1x4x8x16xf32> to vector<4x8x16xf32>
    %2 = vector.shape_cast %1 : vector<4x8x16xf32> to vector<4x8x8x2xf32>
    %3 = vector.extract_strided_slice %2 {offsets = [0, 0, 0, 0], sizes = [4, 8, 8, 1], strides = [1, 1, 1, 1]} : vector<4x8x8x2xf32> to vector<4x8x8x1xf32>
    %4 = vector.shape_cast %3 : vector<4x8x8x1xf32> to vector<4x8x8xf32>
    %c0_3 = arith.constant 0 : index
    %c0_4 = arith.constant 0 : index
    %c0_5 = arith.constant 0 : index
    %c0_6 = arith.constant 0 : index
    %c0_7 = arith.constant 0 : index
    %5 = vector.load %arg4[%c0_3, %c0_4, %c0_5, %c0_6, %c0_7] : memref<1x4x4x8x8xf32, #tpu.memory_space<vmem>>, vector<1x1x4x8x8xf32>
    %6 = vector.shape_cast %5 : vector<1x1x4x8x8xf32> to vector<4x8x8xf32>
    %7 = vector.shape_cast %4 : vector<4x8x8xf32> to vector<1x1x4x8x8xf32>
    tpu.vector_store %arg4[%c0_3, %c0_4, %c0_5, %c0_6, %c0_7], %7 {strides = array<i32>} : memref<1x4x4x8x8xf32, #tpu.memory_space<vmem>>, vector<1x1x4x8x8xf32>,
    %8 = vector.extract_strided_slice %2 {offsets = [0, 0, 0, 1], sizes = [4, 8, 8, 1], strides = [1, 1, 1, 1]} : vector<4x8x8x2xf32> to vector<4x8x8x1xf32>
    %9 = vector.shape_cast %8 : vector<4x8x8x1xf32> to vector<4x8x8xf32>
    %c0_8 = arith.constant 0 : index
    %c1 = arith.constant 1 : index
    %c0_9 = arith.constant 0 : index
    %c0_10 = arith.constant 0 : index
    %c0_11 = arith.constant 0 : index
    %10 = vector.load %arg4[%c0_8, %c1, %c0_9, %c0_10, %c0_11] : memref<1x4x4x8x8xf32, #tpu.memory_space<vmem>>, vector<1x1x4x8x8xf32>
    %11 = vector.shape_cast %10 : vector<1x1x4x8x8xf32> to vector<4x8x8xf32>
    %12 = vector.shape_cast %9 : vector<4x8x8xf32> to vector<1x1x4x8x8xf32>
    tpu.vector_store %arg4[%c0_8, %c1, %c0_9, %c0_10, %c0_11], %12 {strides = array<i32>} : memref<1x4x4x8x8xf32, #tpu.memory_space<vmem>>, vector<1x1x4x8x8xf32>,
    %c0_12 = arith.constant 0 : index
    %c0_13 = arith.constant 0 : index
    %c1_14 = arith.constant 1 : index
    %c0_15 = arith.constant 0 : index
    %13 = tpu.strided_load %arg3[%c0_12, %c0_13, %c1_14, %c0_15] {strides = array<i32: 1, 1, 2, 1>} : memref<1x4x16x16xf32, #tpu.memory_space<vmem>>, vector<1x4x8x16xf32>
    %14 = vector.shape_cast %13 : vector<1x4x8x16xf32> to vector<4x8x16xf32>
    %15 = vector.shape_cast %14 : vector<4x8x16xf32> to vector<4x8x8x2xf32>
    %16 = vector.extract_strided_slice %15 {offsets = [0, 0, 0, 0], sizes = [4, 8, 8, 1], strides = [1, 1, 1, 1]} : vector<4x8x8x2xf32> to vector<4x8x8x1xf32>
    %17 = vector.shape_cast %16 : vector<4x8x8x1xf32> to vector<4x8x8xf32>
    %c0_16 = arith.constant 0 : index
    %c2 = arith.constant 2 : index
    %c0_17 = arith.constant 0 : index
    %c0_18 = arith.constant 0 : index
    %c0_19 = arith.constant 0 : index
    %18 = vector.load %arg4[%c0_16, %c2, %c0_17, %c0_18, %c0_19] : memref<1x4x4x8x8xf32, #tpu.memory_space<vmem>>, vector<1x1x4x8x8xf32>
    %19 = vector.shape_cast %18 : vector<1x1x4x8x8xf32> to vector<4x8x8xf32>
    %20 = vector.shape_cast %17 : vector<4x8x8xf32> to vector<1x1x4x8x8xf32>
    tpu.vector_store %arg4[%c0_16, %c2, %c0_17, %c0_18, %c0_19], %20 {strides = array<i32>} : memref<1x4x4x8x8xf32, #tpu.memory_space<vmem>>, vector<1x1x4x8x8xf32>,
    %21 = vector.extract_strided_slice %15 {offsets = [0, 0, 0, 1], sizes = [4, 8, 8, 1], strides = [1, 1, 1, 1]} : vector<4x8x8x2xf32> to vector<4x8x8x1xf32>
    %22 = vector.shape_cast %21 : vector<4x8x8x1xf32> to vector<4x8x8xf32>
    %c0_20 = arith.constant 0 : index
    %c3 = arith.constant 3 : index
    %c0_21 = arith.constant 0 : index
    %c0_22 = arith.constant 0 : index
    %c0_23 = arith.constant 0 : index
    %23 = vector.load %arg4[%c0_20, %c3, %c0_21, %c0_22, %c0_23] : memref<1x4x4x8x8xf32, #tpu.memory_space<vmem>>, vector<1x1x4x8x8xf32>
    %24 = vector.shape_cast %23 : vector<1x1x4x8x8xf32> to vector<4x8x8xf32>
    %25 = vector.shape_cast %22 : vector<4x8x8xf32> to vector<1x1x4x8x8xf32>
    tpu.vector_store %arg4[%c0_20, %c3, %c0_21, %c0_22, %c0_23], %25 {strides = array<i32>} : memref<1x4x4x8x8xf32, #tpu.memory_space<vmem>>, vector<1x1x4x8x8xf32>,
    return
  }
  func.func @transform_0(%arg0: i32, %arg1: i32, %arg2: i32) -> (i32, i32, i32, i32) {
    %c0_i32 = arith.constant 0 : i32
    %c0_i32_0 = arith.constant 0 : i32
    return %arg0, %arg1, %arg2, %c0_i32 : i32, i32, i32, i32
  }
  func.func @transform_1(%arg0: i32, %arg1: i32, %arg2: i32) -> (i32, i32, i32, i32, i32) {
    %c0_i32 = arith.constant 0 : i32
    %c0_i32_0 = arith.constant 0 : i32
    %c0_i32_1 = arith.constant 0 : i32
    return %arg0, %c0_i32, %arg1, %arg2, %c0_i32_0 : i32, i32, i32, i32, i32
  }
}

</mosaic_0001>

<llo_original>
// kernel: tpu_custom_call.1
$region0: #{tpu_custom_call.1}
  #allocation0 [shape = 'u32[]', space=smem, size = 0x4, offset = 0x4, fixed_abs, tag = 'smem constant byte address 0x4 - core index']
  #allocation1 [shape = 'u32[72,128]{1,0:T(1,128)}', space=vmem, size = 0x9000, scoped, tag = 'internal scratch']
  %s0 = inlined_call_operand.hbm [shape: f32[2,4,16,16], index: 0, kind: input, shape index: {}]
  %s1 = inlined_call_operand.hbm [shape: f32[2,4,4,8,8], index: 1, kind: output, shape index: {}]
  %s2 = sld [smem:[#allocation0]]
  $region41: #{tpu_custom_call.1} parent=0
    _
  %s4 = ssub.s32 1, %s2
  %s5 = scalar_select 0, %s4, %s2
  $region1: #{tpu_custom_call.1} parent=0
    #allocation2 [shape = 'u8[65536]{0}', space=vmem, size = 0x10000, scoped, tag = 'input window, operand 0']
    #allocation3 [shape = 's32[2]{0}', space=sflag, size = 0x8, scoped, tag = 'scoped memory for tpu_custom_call.1']
    #allocation4 [shape = 's32[2]{0}', space=sflag, size = 0x8, scoped, tag = 'scoped memory for tpu_custom_call.1']
    #allocation5 [shape = 'u8[131072]{0}', space=vmem, size = 0x20000, scoped, tag = 'output window, operand 0']
    %6 = vsyncpa [#allocation3], 0
    %s7 = scalar_lea.sflag [#allocation3], 1
    %8 = vsyncpa %s7, 0
    %9 = vsyncpa [#allocation4], 0
    %s10 = scalar_lea.sflag [#allocation4], 1
    %11 = vsyncpa %s10, 0
    loop: start=0, step=1, limit=4
    $region2: #{tpu_custom_call.1} parent=1 // loop_pre_header
      _
    $region3: #{tpu_custom_call.1} parent=1 // loop_header
      %s13 = sphi 0, %s17
      %p14 = scmp.ge.s32.totalorder %s13, 4
      %s20 = sphi 0, %s39
      %s21 = sphi 0, %s35
      %s22 = sphi 0, %s31
      %s23 = sphi 0, %s20
      %s24 = sphi 0, %s21
      %s25 = sphi 0, %s22
      %s26 = sphi 0, %s23
      %s27 = sphi 0, %s24
      %s28 = sphi 0, %s25
      %s46 = sphi 0, %s48
      %s49 = sphi 0, %s46
      %s50 = sphi 0, %s49
      %s66 = sphi 0, %s50
      %s76 = sphi 0, %s78
      %s79 = sphi 0, %s76
      %s80 = sphi 0, %s79
      %s96 = sphi 0, %s80
    $region4: #{tpu_custom_call.1} parent=1 // loop_header_branch
      %16 = sbr.rel (%p14) target = $region8
    $region5: #{tpu_custom_call.1} parent=1 // loop_body
      %s18 = ssub.s32 %s13, 1
      %s19 = ssub.s32 %s13, 2
      %s29 = sadd.s32 1, %s22
      %p30 = scmp.ge.s32.totalorder %s29, 1
      %s31 = scalar_select %p30, 0, %s29
      %s32 = sadd.s32 1, %s21
      %s33 = scalar_select %p30, %s32, %s21
      %p34 = scmp.ge.s32.totalorder %s33, 1
      %s35 = scalar_select %p34, 0, %s33
      %s36 = sadd.s32 1, %s20
      %s37 = scalar_select %p34, %s36, %s20
      %p38 = scmp.ge.s32.totalorder %s37, 2
      %s39 = scalar_select %p38, 0, %s37
      %s40 = ssub.s32 %s20, %s39
      %s41 = ssub.s32 %s21, %s35
      %s42 = sor.u32 %s40, %s41
      %s43 = ssub.s32 %s22, %s31
      %s44 = sor.u32 %s42, %s43
      %p45 = scmp.eq.s32.totalorder %s44, 0
      %s47 = sadd.s32 %s46, 1
      %s48 = scalar_select %p45, %s46, %s47
      %p51 = pneg %p45
      %p52 = scmp.eq.s32.totalorder %s13, 1
      %p53 = por %p51, %p52
      %p54 = scmp.ne.s32.totalorder %s46, %s49
      %p55 = scmp.eq.s32.totalorder %s13, 0
      %p56 = por %p54, %p55
      %p57 = scmp.ne.s32.totalorder %s46, %s49
      %p58 = scmp.eq.s32.totalorder %s18, 1
      %p59 = por %p57, %p58
      %p60 = scmp.ne.s32.totalorder %s49, %s50
      %p61 = scmp.eq.s32.totalorder %s18, 0
      %p62 = por %p60, %p61
      %p63 = scmp.ne.s32.totalorder %s49, %s50
      %p64 = scmp.eq.s32.totalorder %s19, 1
      %p65 = por %p63, %p64
      %p67 = scmp.ne.s32.totalorder %s50, %s66
      %p68 = scmp.eq.s32.totalorder %s19, 0
      %p69 = por %p67, %p68
      %s70 = ssub.s32 %s20, %s39
      %s71 = ssub.s32 %s21, %s35
      %s72 = sor.u32 %s70, %s71
      %s73 = ssub.s32 %s22, %s31
      %s74 = sor.u32 %s72, %s73
      %p75 = scmp.eq.s32.totalorder %s74, 0
      %s77 = sadd.s32 %s76, 1
      %s78 = scalar_select %p75, %s76, %s77
      %p81 = pneg %p75
      %p82 = scmp.eq.s32.totalorder %s13, 1
      %p83 = por %p81, %p82
      %p84 = scmp.ne.s32.totalorder %s76, %s79
      %p85 = scmp.eq.s32.totalorder %s13, 0
      %p86 = por %p84, %p85
      %p87 = scmp.ne.s32.totalorder %s76, %s79
      %p88 = scmp.eq.s32.totalorder %s18, 1
      %p89 = por %p87, %p88
      %p90 = scmp.ne.s32.totalorder %s79, %s80
      %p91 = scmp.eq.s32.totalorder %s18, 0
      %p92 = por %p90, %p91
      %p93 = scmp.ne.s32.totalorder %s79, %s80
      %p94 = scmp.eq.s32.totalorder %s19, 1
      %p95 = por %p93, %p94
      %p97 = scmp.ne.s32.totalorder %s80, %s96
      %p98 = scmp.eq.s32.totalorder %s19, 0
      %p99 = por %p97, %p98
      %p100 = scmp.le.s32.totalorder 1, %s13
      %p101 = scmp.lt.s32.totalorder %s13, 3
      %p102 = pnand %p100, %p101
      %p103 = pneg %p102
      // Predicated region
      $region9: #{tpu_custom_call.1} parent=5 // pred_check
        _
      $region10: #{tpu_custom_call.1} parent=5 // pred_check_branch
        %105 = sbr.rel (%p102) target = $region12
      $region11: #{tpu_custom_call.1} parent=5 // pred_region
        %s106 = ssub.s32 %s13, 1
      $region12: #{tpu_custom_call.1} parent=5 // pred_fallthru
        _
      %p107 = scmp.lt.s32.totalorder %s13, 2
      // Predicated region
      $region13: #{tpu_custom_call.1} parent=5 // pred_check
        %p108 = pneg %p107
      $region14: #{tpu_custom_call.1} parent=5 // pred_check_branch
        %110 = sbr.rel (%p108) target = $region16
      $region15: #{tpu_custom_call.1} parent=5 // pred_region
        // Predicated region
        $region17: #{tpu_custom_call.1} parent=15 // pred_check
          %p111 = pneg %p56
        $region18: #{tpu_custom_call.1} parent=15 // pred_check_branch
          %113 = sbr.rel (%p111) target = $region20
        $region19: #{tpu_custom_call.1} parent=15 // pred_region
          %s114 = sand.u32 %s46, 1
          %s115 = scalar_lea.sflag [#allocation3], %s114
          %s116 = sand.u32 %s46, 1
          %s117 = smul.addr %s116, 64
          %s118 = scalar_lea.vmem [#allocation2], %s117
          %s119 = smul.u32 4, %s21
          %s120 = smul.u32 2, %s22
          %122 = vsyncadd %s115, 0
          %s123 = smul.addr %s119, 2
          %s124 = sadd.s32 %s120, %s123
          %s125 = smul.addr %s20, 8
          %s126 = sadd.s32 %s124, %s125
          %s127 = smul.addr %s126, 8
          %s128 = scalar_lea.hbm %s0, %s127
          %s129 = sshll.u32 %s128, 4
          %s130 = int_to_ptr.hbm [resolvable:$true] %s129
          %s131 = sshll.u32 %s118, 4
          %s132 = int_to_ptr.vmem [resolvable:$true] %s131
          %137 = dma.hbm_to_vmem [thread:$0]  %s130, 1024, %s132, %s115, 128, 128, 8
        $region20: #{tpu_custom_call.1} parent=15 // pred_fallthru
          _
      $region16: #{tpu_custom_call.1} parent=5 // pred_fallthru
        _
      %p138 = scmp.le.s32.totalorder 1, %s13
      %p139 = scmp.lt.s32.totalorder %s13, 3
      %p140 = pnand %p138, %p139
      %p141 = pneg %p140
      // Predicated region
      $region21: #{tpu_custom_call.1} parent=5 // pred_check
        _
      $region22: #{tpu_custom_call.1} parent=5 // pred_check_branch
        %143 = sbr.rel (%p140) target = $region24
      $region23: #{tpu_custom_call.1} parent=5 // pred_region
        %s144 = ssub.s32 %s13, 1
        %s145 = sand.u32 %s49, 1
        %s146 = scalar_lea.sflag [#allocation3], %s145
        %s147 = sand.u32 %s49, 1
        %s148 = smul.addr %s147, 64
        %s149 = scalar_lea.vmem [#allocation2], %s148
        // Predicated region
        $region25: #{tpu_custom_call.1} parent=23 // pred_check
          %p150 = pneg %p62
        $region26: #{tpu_custom_call.1} parent=23 // pred_check_branch
          %152 = sbr.rel (%p150) target = $region28
        $region27: #{tpu_custom_call.1} parent=23 // pred_region
          %154 = dma.done %s146, 1024
        $region28: #{tpu_custom_call.1} parent=23 // pred_fallthru
          _
        %s155 = sand.u32 %s49, 1
        %s156 = scalar_lea.sflag [#allocation3], %s155
        %s157 = sand.u32 %s49, 1
        %s158 = smul.addr %s157, 64
        %s159 = scalar_lea.vmem [#allocation2], %s158
        %p160 = pneg %p62
        %p161 = pneg %p59
        %p162 = pneg %p92
        %p163 = pneg %p89
        %s164 = sand.u32 %s79, 1
        %s165 = scalar_lea.sflag [#allocation4], %s164
        %s166 = sand.u32 %s79, 1
        %s167 = smul.addr %s166, 128
        %s168 = scalar_lea.vmem [#allocation5], %s167
        %s169 = smul.u32 4, %s24
        %s170 = smul.u32 2, %s25
        %s171 = smul.u32 4, %s24
        %v172 = vld [vmem:[%s149] ss:$2 sm:$0xff]
        %s173 = scalar_lea.vmem %s149, 16 [#allocation2]
        %v174 = vld [vmem:[%s173] ss:$2 sm:$0xff]
        %s175 = scalar_lea.vmem %s149, 32 [#allocation2]
        %v176 = vld [vmem:[%s175] ss:$2 sm:$0xff]
        %s177 = scalar_lea.vmem %s149, 48 [#allocation2]
        %v178 = vld [vmem:[%s177] ss:$2 sm:$0xff]
        %183 = vrot.lane.b32.xlu0 %v172, 126
        %v184 = vpop.permute.xlu0 %183
        %185 = vrot.lane.b32.xlu0 %v174, 126
        %v186 = vpop.permute.xlu0 %185
        %187 = vrot.lane.b32.xlu0 %v176, 126
        %v188 = vpop.permute.xlu0 %187
        %189 = vrot.lane.b32.xlu0 %v178, 126
        %v190 = vpop.permute.xlu0 %189
        %195 = vrot.lane.b32.xlu0 %v172, 124
        %v196 = vpop.permute.xlu0 %195
        %197 = vrot.lane.b32.xlu0 %v174, 124
        %v198 = vpop.permute.xlu0 %197
        %199 = vrot.lane.b32.xlu0 %v176, 124
        %v200 = vpop.permute.xlu0 %199
        %201 = vrot.lane.b32.xlu0 %v178, 124
        %v202 = vpop.permute.xlu0 %201
        %207 = vrot.lane.b32.xlu0 %v172, 122
        %v208 = vpop.permute.xlu0 %207
        %209 = vrot.lane.b32.xlu0 %v174, 122
        %v210 = vpop.permute.xlu0 %209
        %211 = vrot.lane.b32.xlu0 %v176, 122
        %v212 = vpop.permute.xlu0 %211
        %213 = vrot.lane.b32.xlu0 %v178, 122
        %v214 = vpop.permute.xlu0 %213
        %219 = vrot.lane.b32.xlu0 %v172, 120
        %v220 = vpop.permute.xlu0 %219
        %221 = vrot.lane.b32.xlu0 %v174, 120
        %v222 = vpop.permute.xlu0 %221
        %223 = vrot.lane.b32.xlu0 %v176, 120
        %v224 = vpop.permute.xlu0 %223
        %225 = vrot.lane.b32.xlu0 %v178, 120
        %v226 = vpop.permute.xlu0 %225
        %231 = vrot.lane.b32.xlu0 %v172, 118
        %v232 = vpop.permute.xlu0 %231
        %233 = vrot.lane.b32.xlu0 %v174, 118
        %v234 = vpop.permute.xlu0 %233
        %235 = vrot.lane.b32.xlu0 %v176, 118
        %v236 = vpop.permute.xlu0 %235
        %237 = vrot.lane.b32.xlu0 %v178, 118
        %v238 = vpop.permute.xlu0 %237
        %243 = vrot.lane.b32.xlu0 %v172, 116
        %v244 = vpop.permute.xlu0 %243
        %245 = vrot.lane.b32.xlu0 %v174, 116
        %v246 = vpop.permute.xlu0 %245
        %247 = vrot.lane.b32.xlu0 %v176, 116
        %v248 = vpop.permute.xlu0 %247
        %249 = vrot.lane.b32.xlu0 %v178, 116
        %v250 = vpop.permute.xlu0 %249
        %255 = vrot.lane.b32.xlu0 %v172, 114
        %v256 = vpop.permute.xlu0 %255
        %257 = vrot.lane.b32.xlu0 %v174, 114
        %v258 = vpop.permute.xlu0 %257
        %259 = vrot.lane.b32.xlu0 %v176, 114
        %v260 = vpop.permute.xlu0 %259
        %261 = vrot.lane.b32.xlu0 %v178, 114
        %v262 = vpop.permute.xlu0 %261
        %v267 = vrot.slane %v196, 4
        %vm268 = vcmask 1047556
        %v269 = vsel %vm268, %v267, %v172
        %v270 = vrot.slane %v172, 4
        %v271 = vsel %vm268, %v196, %v270
        %v273 = vunpack.c.l.s4 1983009808
        %v274 = vunpack.c.0.s8 %v273
        %v275 = vperm.slane %v269, %v274
        %v277 = vunpack.c.l.s4 1983009808
        %v278 = vunpack.c.0.s8 %v277
        %v279 = vperm.slane %v271, %v278
        %v280 = vrot.slane %v208, 4
        %v281 = vsel %vm268, %v280, %v184
        %v282 = vrot.slane %v184, 4
        %v283 = vsel %vm268, %v208, %v282
        %v285 = vunpack.c.l.s4 1983009808
        %v286 = vunpack.c.0.s8 %v285
        %v287 = vperm.slane %v281, %v286
        %v289 = vunpack.c.l.s4 1983009808
        %v290 = vunpack.c.0.s8 %v289
        %v291 = vperm.slane %v283, %v290
        %v292 = vrot.slane %v244, 4
        %v293 = vsel %vm268, %v292, %v220
        %v294 = vrot.slane %v220, 4
        %v295 = vsel %vm268, %v244, %v294
        %v297 = vunpack.c.l.s4 1983009808
        %v298 = vunpack.c.0.s8 %v297
        %v299 = vperm.slane %v293, %v298
        %v301 = vunpack.c.l.s4 1983009808
        %v302 = vunpack.c.0.s8 %v301
        %v303 = vperm.slane %v295, %v302
        %v304 = vrot.slane %v256, 4
        %v305 = vsel %vm268, %v304, %v232
        %v306 = vrot.slane %v232, 4
        %v307 = vsel %vm268, %v256, %v306
        %v309 = vunpack.c.l.s4 1983009808
        %v310 = vunpack.c.0.s8 %v309
        %v311 = vperm.slane %v305, %v310
        %v313 = vunpack.c.l.s4 1983009808
        %v314 = vunpack.c.0.s8 %v313
        %v315 = vperm.slane %v307, %v314
        %v316 = vrot.slane %v287, 4
        %v317 = vsel %vm268, %v316, %v275
        %v318 = vrot.slane %v275, 4
        %v319 = vsel %vm268, %v287, %v318
        %v321 = vunpack.c.l.s4 1934713408
        %v322 = vunpack.c.0.s8 %v321
        %v323 = vperm.slane %v317, %v322
        %v325 = vunpack.c.l.s4 1934713408
        %v326 = vunpack.c.0.s8 %v325
        %v327 = vperm.slane %v319, %v326
        %v328 = vrot.slane %v291, 4
        %v329 = vsel %vm268, %v328, %v279
        %v330 = vrot.slane %v279, 4
        %v331 = vsel %vm268, %v291, %v330
        %v333 = vunpack.c.l.s4 1934713408
        %v334 = vunpack.c.0.s8 %v333
        %v335 = vperm.slane %v329, %v334
        %v337 = vunpack.c.l.s4 1934713408
        %v338 = vunpack.c.0.s8 %v337
        %v339 = vperm.slane %v331, %v338
        %v340 = vrot.slane %v311, 4
        %v341 = vsel %vm268, %v340, %v299
        %v342 = vrot.slane %v299, 4
        %v343 = vsel %vm268, %v311, %v342
        %v345 = vunpack.c.l.s4 1934713408
        %v346 = vunpack.c.0.s8 %v345
        %v347 = vperm.slane %v341, %v346
        %v349 = vunpack.c.l.s4 1934713408
        %v350 = vunpack.c.0.s8 %v349
        %v351 = vperm.slane %v343, %v350
        %v352 = vrot.slane %v315, 4
        %v353 = vsel %vm268, %v352, %v303
        %v354 = vrot.slane %v303, 4
        %v355 = vsel %vm268, %v315, %v354
        %v357 = vunpack.c.l.s4 1934713408
        %v358 = vunpack.c.0.s8 %v357
        %v359 = vperm.slane %v353, %v358
        %v361 = vunpack.c.l.s4 1934713408
        %v362 = vunpack.c.0.s8 %v361
        %v363 = vperm.slane %v355, %v362
        %v364 = vrot.slane %v347, 4
        %v365 = vsel %vm268, %v364, %v323
        %v366 = vrot.slane %v323, 4
        %v367 = vsel %vm268, %v347, %v366
        %v368 = vrot.slane %v351, 4
        %v369 = vsel %vm268, %v368, %v327
        %v370 = vrot.slane %v327, 4
        %v371 = vsel %vm268, %v351, %v370
        %v372 = vrot.slane %v359, 4
        %v373 = vsel %vm268, %v372, %v335
        %v374 = vrot.slane %v335, 4
        %v375 = vsel %vm268, %v359, %v374
        %v376 = vrot.slane %v363, 4
        %v377 = vsel %vm268, %v376, %v339
        %v378 = vrot.slane %v339, 4
        %v379 = vsel %vm268, %v363, %v378
        %v380 = vrot.slane %v198, 4
        %v381 = vsel %vm268, %v380, %v174
        %v382 = vrot.slane %v174, 4
        %v383 = vsel %vm268, %v198, %v382
        %v385 = vunpack.c.l.s4 1983009808
        %v386 = vunpack.c.0.s8 %v385
        %v387 = vperm.slane %v381, %v386
        %v389 = vunpack.c.l.s4 1983009808
        %v390 = vunpack.c.0.s8 %v389
        %v391 = vperm.slane %v383, %v390
        %v392 = vrot.slane %v210, 4
        %v393 = vsel %vm268, %v392, %v186
        %v394 = vrot.slane %v186, 4
        %v395 = vsel %vm268, %v210, %v394
        %v397 = vunpack.c.l.s4 1983009808
        %v398 = vunpack.c.0.s8 %v397
        %v399 = vperm.slane %v393, %v398
        %v401 = vunpack.c.l.s4 1983009808
        %v402 = vunpack.c.0.s8 %v401
        %v403 = vperm.slane %v395, %v402
        %v404 = vrot.slane %v246, 4
        %v405 = vsel %vm268, %v404, %v222
        %v406 = vrot.slane %v222, 4
        %v407 = vsel %vm268, %v246, %v406
        %v409 = vunpack.c.l.s4 1983009808
        %v410 = vunpack.c.0.s8 %v409
        %v411 = vperm.slane %v405, %v410
        %v413 = vunpack.c.l.s4 1983009808
        %v414 = vunpack.c.0.s8 %v413
        %v415 = vperm.slane %v407, %v414
        %v416 = vrot.slane %v258, 4
        %v417 = vsel %vm268, %v416, %v234
        %v418 = vrot.slane %v234, 4
        %v419 = vsel %vm268, %v258, %v418
        %v421 = vunpack.c.l.s4 1983009808
        %v422 = vunpack.c.0.s8 %v421
        %v423 = vperm.slane %v417, %v422
        %v425 = vunpack.c.l.s4 1983009808
        %v426 = vunpack.c.0.s8 %v425
        %v427 = vperm.slane %v419, %v426
        %v428 = vrot.slane %v399, 4
        %v429 = vsel %vm268, %v428, %v387
        %v430 = vrot.slane %v387, 4
        %v431 = vsel %vm268, %v399, %v430
        %v433 = vunpack.c.l.s4 1934713408
        %v434 = vunpack.c.0.s8 %v433
        %v435 = vperm.slane %v429, %v434
        %v437 = vunpack.c.l.s4 1934713408
        %v438 = vunpack.c.0.s8 %v437
        %v439 = vperm.slane %v431, %v438
        %v440 = vrot.slane %v403, 4
        %v441 = vsel %vm268, %v440, %v391
        %v442 = vrot.slane %v391, 4
        %v443 = vsel %vm268, %v403, %v442
        %v445 = vunpack.c.l.s4 1934713408
        %v446 = vunpack.c.0.s8 %v445
        %v447 = vperm.slane %v441, %v446
        %v449 = vunpack.c.l.s4 1934713408
        %v450 = vunpack.c.0.s8 %v449
        %v451 = vperm.slane %v443, %v450
        %v452 = vrot.slane %v423, 4
        %v453 = vsel %vm268, %v452, %v411
        %v454 = vrot.slane %v411, 4
        %v455 = vsel %vm268, %v423, %v454
        %v457 = vunpack.c.l.s4 1934713408
        %v458 = vunpack.c.0.s8 %v457
        %v459 = vperm.slane %v453, %v458
        %v461 = vunpack.c.l.s4 1934713408
        %v462 = vunpack.c.0.s8 %v461
        %v463 = vperm.slane %v455, %v462
        %v464 = vrot.slane %v427, 4
        %v465 = vsel %vm268, %v464, %v415
        %v466 = vrot.slane %v415, 4
        %v467 = vsel %vm268, %v427, %v466
        %v469 = vunpack.c.l.s4 1934713408
        %v470 = vunpack.c.0.s8 %v469
        %v471 = vperm.slane %v465, %v470
        %v473 = vunpack.c.l.s4 1934713408
        %v474 = vunpack.c.0.s8 %v473
        %v475 = vperm.slane %v467, %v474
        %v476 = vrot.slane %v459, 4
        %v477 = vsel %vm268, %v476, %v435
        %v478 = vrot.slane %v435, 4
        %v479 = vsel %vm268, %v459, %v478
        %v480 = vrot.slane %v463, 4
        %v481 = vsel %vm268, %v480, %v439
        %v482 = vrot.slane %v439, 4
        %v483 = vsel %vm268, %v463, %v482
        %v484 = vrot.slane %v471, 4
        %v485 = vsel %vm268, %v484, %v447
        %v486 = vrot.slane %v447, 4
        %v487 = vsel %vm268, %v471, %v486
        %v488 = vrot.slane %v475, 4
        %v489 = vsel %vm268, %v488, %v451
        %v490 = vrot.slane %v451, 4
        %v491 = vsel %vm268, %v475, %v490
        %v492 = vrot.slane %v200, 4
        %v493 = vsel %vm268, %v492, %v176
        %v494 = vrot.slane %v176, 4
        %v495 = vsel %vm268, %v200, %v494
        %v497 = vunpack.c.l.s4 1983009808
        %v498 = vunpack.c.0.s8 %v497
        %v499 = vperm.slane %v493, %v498
        %v501 = vunpack.c.l.s4 1983009808
        %v502 = vunpack.c.0.s8 %v501
        %v503 = vperm.slane %v495, %v502
        %v504 = vrot.slane %v212, 4
        %v505 = vsel %vm268, %v504, %v188
        %v506 = vrot.slane %v188, 4
        %v507 = vsel %vm268, %v212, %v506
        %v509 = vunpack.c.l.s4 1983009808
        %v510 = vunpack.c.0.s8 %v509
        %v511 = vperm.slane %v505, %v510
        %v513 = vunpack.c.l.s4 1983009808
        %v514 = vunpack.c.0.s8 %v513
        %v515 = vperm.slane %v507, %v514
        %v516 = vrot.slane %v248, 4
        %v517 = vsel %vm268, %v516, %v224
        %v518 = vrot.slane %v224, 4
        %v519 = vsel %vm268, %v248, %v518
        %v521 = vunpack.c.l.s4 1983009808
        %v522 = vunpack.c.0.s8 %v521
        %v523 = vperm.slane %v517, %v522
        %v525 = vunpack.c.l.s4 1983009808
        %v526 = vunpack.c.0.s8 %v525
        %v527 = vperm.slane %v519, %v526
        %v528 = vrot.slane %v260, 4
        %v529 = vsel %vm268, %v528, %v236
        %v530 = vrot.slane %v236, 4
        %v531 = vsel %vm268, %v260, %v530
        %v533 = vunpack.c.l.s4 1983009808
        %v534 = vunpack.c.0.s8 %v533
        %v535 = vperm.slane %v529, %v534
        %v537 = vunpack.c.l.s4 1983009808
        %v538 = vunpack.c.0.s8 %v537
        %v539 = vperm.slane %v531, %v538
        %v540 = vrot.slane %v511, 4
        %v541 = vsel %vm268, %v540, %v499
        %v542 = vrot.slane %v499, 4
        %v543 = vsel %vm268, %v511, %v542
        %v545 = vunpack.c.l.s4 1934713408
        %v546 = vunpack.c.0.s8 %v545
        %v547 = vperm.slane %v541, %v546
        %v549 = vunpack.c.l.s4 1934713408
        %v550 = vunpack.c.0.s8 %v549
        %v551 = vperm.slane %v543, %v550
        %v552 = vrot.slane %v515, 4
        %v553 = vsel %vm268, %v552, %v503
        %v554 = vrot.slane %v503, 4
        %v555 = vsel %vm268, %v515, %v554
        %v557 = vunpack.c.l.s4 1934713408
        %v558 = vunpack.c.0.s8 %v557
        %v559 = vperm.slane %v553, %v558
        %v561 = vunpack.c.l.s4 1934713408
        %v562 = vunpack.c.0.s8 %v561
        %v563 = vperm.slane %v555, %v562
        %v564 = vrot.slane %v535, 4
        %v565 = vsel %vm268, %v564, %v523
        %v566 = vrot.slane %v523, 4
        %v567 = vsel %vm268, %v535, %v566
        %v569 = vunpack.c.l.s4 1934713408
        %v570 = vunpack.c.0.s8 %v569
        %v571 = vperm.slane %v565, %v570
        %v573 = vunpack.c.l.s4 1934713408
        %v574 = vunpack.c.0.s8 %v573
        %v575 = vperm.slane %v567, %v574
        %v576 = vrot.slane %v539, 4
        %v577 = vsel %vm268, %v576, %v527
        %v578 = vrot.slane %v527, 4
        %v579 = vsel %vm268, %v539, %v578
        %v581 = vunpack.c.l.s4 1934713408
        %v582 = vunpack.c.0.s8 %v581
        %v583 = vperm.slane %v577, %v582
        %v585 = vunpack.c.l.s4 1934713408
        %v586 = vunpack.c.0.s8 %v585
        %v587 = vperm.slane %v579, %v586
        %v588 = vrot.slane %v571, 4
        %v589 = vsel %vm268, %v588, %v547
        %v590 = vrot.slane %v547, 4
        %v591 = vsel %vm268, %v571, %v590
        %v592 = vrot.slane %v575, 4
        %v593 = vsel %vm268, %v592, %v551
        %v594 = vrot.slane %v551, 4
        %v595 = vsel %vm268, %v575, %v594
        %v596 = vrot.slane %v583, 4
        %v597 = vsel %vm268, %v596, %v559
        %v598 = vrot.slane %v559, 4
        %v599 = vsel %vm268, %v583, %v598
        %v600 = vrot.slane %v587, 4
        %v601 = vsel %vm268, %v600, %v563
        %v602 = vrot.slane %v563, 4
        %v603 = vsel %vm268, %v587, %v602
        %v604 = vrot.slane %v202, 4
        %v605 = vsel %vm268, %v604, %v178
        %v606 = vrot.slane %v178, 4
        %v607 = vsel %vm268, %v202, %v606
        %v609 = vunpack.c.l.s4 1983009808
        %v610 = vunpack.c.0.s8 %v609
        %v611 = vperm.slane %v605, %v610
        %v613 = vunpack.c.l.s4 1983009808
        %v614 = vunpack.c.0.s8 %v613
        %v615 = vperm.slane %v607, %v614
        %v616 = vrot.slane %v214, 4
        %v617 = vsel %vm268, %v616, %v190
        %v618 = vrot.slane %v190, 4
        %v619 = vsel %vm268, %v214, %v618
        %v621 = vunpack.c.l.s4 1983009808
        %v622 = vunpack.c.0.s8 %v621
        %v623 = vperm.slane %v617, %v622
        %v625 = vunpack.c.l.s4 1983009808
        %v626 = vunpack.c.0.s8 %v625
        %v627 = vperm.slane %v619, %v626
        %v628 = vrot.slane %v250, 4
        %v629 = vsel %vm268, %v628, %v226
        %v630 = vrot.slane %v226, 4
        %v631 = vsel %vm268, %v250, %v630
        %v633 = vunpack.c.l.s4 1983009808
        %v634 = vunpack.c.0.s8 %v633
        %v635 = vperm.slane %v629, %v634
        %v637 = vunpack.c.l.s4 1983009808
        %v638 = vunpack.c.0.s8 %v637
        %v639 = vperm.slane %v631, %v638
        %v640 = vrot.slane %v262, 4
        %v641 = vsel %vm268, %v640, %v238
        %v642 = vrot.slane %v238, 4
        %v643 = vsel %vm268, %v262, %v642
        %v645 = vunpack.c.l.s4 1983009808
        %v646 = vunpack.c.0.s8 %v645
        %v647 = vperm.slane %v641, %v646
        %v649 = vunpack.c.l.s4 1983009808
        %v650 = vunpack.c.0.s8 %v649
        %v651 = vperm.slane %v643, %v650
        %v652 = vrot.slane %v623, 4
        %v653 = vsel %vm268, %v652, %v611
        %v654 = vrot.slane %v611, 4
        %v655 = vsel %vm268, %v623, %v654
        %v657 = vunpack.c.l.s4 1934713408
        %v658 = vunpack.c.0.s8 %v657
        %v659 = vperm.slane %v653, %v658
        %v661 = vunpack.c.l.s4 1934713408
        %v662 = vunpack.c.0.s8 %v661
        %v663 = vperm.slane %v655, %v662
        %v664 = vrot.slane %v627, 4
        %v665 = vsel %vm268, %v664, %v615
        %v666 = vrot.slane %v615, 4
        %v667 = vsel %vm268, %v627, %v666
        %v669 = vunpack.c.l.s4 1934713408
        %v670 = vunpack.c.0.s8 %v669
        %v671 = vperm.slane %v665, %v670
        %v673 = vunpack.c.l.s4 1934713408
        %v674 = vunpack.c.0.s8 %v673
        %v675 = vperm.slane %v667, %v674
        %v676 = vrot.slane %v647, 4
        %v677 = vsel %vm268, %v676, %v635
        %v678 = vrot.slane %v635, 4
        %v679 = vsel %vm268, %v647, %v678
        %v681 = vunpack.c.l.s4 1934713408
        %v682 = vunpack.c.0.s8 %v681
        %v683 = vperm.slane %v677, %v682
        %v685 = vunpack.c.l.s4 1934713408
        %v686 = vunpack.c.0.s8 %v685
        %v687 = vperm.slane %v679, %v686
        %v688 = vrot.slane %v651, 4
        %v689 = vsel %vm268, %v688, %v639
        %v690 = vrot.slane %v639, 4
        %v691 = vsel %vm268, %v651, %v690
        %v693 = vunpack.c.l.s4 1934713408
        %v694 = vunpack.c.0.s8 %v693
        %v695 = vperm.slane %v689, %v694
        %v697 = vunpack.c.l.s4 1934713408
        %v698 = vunpack.c.0.s8 %v697
        %v699 = vperm.slane %v691, %v698
        %v700 = vrot.slane %v683, 4
        %v701 = vsel %vm268, %v700, %v659
        %v702 = vrot.slane %v659, 4
        %v703 = vsel %vm268, %v683, %v702
        %v704 = vrot.slane %v687, 4
        %v705 = vsel %vm268, %v704, %v663
        %v706 = vrot.slane %v663, 4
        %v707 = vsel %vm268, %v687, %v706
        %v708 = vrot.slane %v695, 4
        %v709 = vsel %vm268, %v708, %v671
        %v710 = vrot.slane %v671, 4
        %v711 = vsel %vm268, %v695, %v710
        %v712 = vrot.slane %v699, 4
        %v713 = vsel %vm268, %v712, %v675
        %v714 = vrot.slane %v675, 4
        %v715 = vsel %vm268, %v699, %v714
        %748 = vset.pattern.permute.xlu0 0
        %749 = vperm.xlu0 %748, %v365
        %v750 = vpop.permute.xlu0 %749
        %751 = vset.pattern.permute.xlu0 0
        %752 = vperm.xlu0 %751, %v367
        %v753 = vpop.permute.xlu0 %752
        %754 = vset.pattern.permute.xlu0 0
        %755 = vperm.xlu0 %754, %v369
        %v756 = vpop.permute.xlu0 %755
        %757 = vset.pattern.permute.xlu0 0
        %758 = vperm.xlu0 %757, %v371
        %v759 = vpop.permute.xlu0 %758
        %760 = vset.pattern.permute.xlu0 0
        %761 = vperm.xlu0 %760, %v373
        %v762 = vpop.permute.xlu0 %761
        %763 = vset.pattern.permute.xlu0 0
        %764 = vperm.xlu0 %763, %v375
        %v765 = vpop.permute.xlu0 %764
        %766 = vset.pattern.permute.xlu0 0
        %767 = vperm.xlu0 %766, %v377
        %v768 = vpop.permute.xlu0 %767
        %769 = vset.pattern.permute.xlu0 0
        %770 = vperm.xlu0 %769, %v379
        %v771 = vpop.permute.xlu0 %770
        %772 = vset.pattern.permute.xlu0 0
        %773 = vperm.xlu0 %772, %v477
        %v774 = vpop.permute.xlu0 %773
        %775 = vset.pattern.permute.xlu0 0
        %776 = vperm.xlu0 %775, %v479
        %v777 = vpop.permute.xlu0 %776
        %778 = vset.pattern.permute.xlu0 0
        %779 = vperm.xlu0 %778, %v481
        %v780 = vpop.permute.xlu0 %779
        %781 = vset.pattern.permute.xlu0 0
        %782 = vperm.xlu0 %781, %v483
        %v783 = vpop.permute.xlu0 %782
        %784 = vset.pattern.permute.xlu0 0
        %785 = vperm.xlu0 %784, %v485
        %v786 = vpop.permute.xlu0 %785
        %787 = vset.pattern.permute.xlu0 0
        %788 = vperm.xlu0 %787, %v487
        %v789 = vpop.permute.xlu0 %788
        %790 = vset.pattern.permute.xlu0 0
        %791 = vperm.xlu0 %790, %v489
        %v792 = vpop.permute.xlu0 %791
        %793 = vset.pattern.permute.xlu0 0
        %794 = vperm.xlu0 %793, %v491
        %v795 = vpop.permute.xlu0 %794
        %796 = vset.pattern.permute.xlu0 0
        %797 = vperm.xlu0 %796, %v589
        %v798 = vpop.permute.xlu0 %797
        %799 = vset.pattern.permute.xlu0 0
        %800 = vperm.xlu0 %799, %v591
        %v801 = vpop.permute.xlu0 %800
        %802 = vset.pattern.permute.xlu0 0
        %803 = vperm.xlu0 %802, %v593
        %v804 = vpop.permute.xlu0 %803
        %805 = vset.pattern.permute.xlu0 0
        %806 = vperm.xlu0 %805, %v595
        %v807 = vpop.permute.xlu0 %806
        %808 = vset.pattern.permute.xlu0 0
        %809 = vperm.xlu0 %808, %v597
        %v810 = vpop.permute.xlu0 %809
        %811 = vset.pattern.permute.xlu0 0
        %812 = vperm.xlu0 %811, %v599
        %v813 = vpop.permute.xlu0 %812
        %814 = vset.pattern.permute.xlu0 0
        %815 = vperm.xlu0 %814, %v601
        %v816 = vpop.permute.xlu0 %815
        %817 = vset.pattern.permute.xlu0 0
        %818 = vperm.xlu0 %817, %v603
        %v819 = vpop.permute.xlu0 %818
        %820 = vset.pattern.permute.xlu0 0
        %821 = vperm.xlu0 %820, %v701
        %v822 = vpop.permute.xlu0 %821
        %823 = vset.pattern.permute.xlu0 0
        %824 = vperm.xlu0 %823, %v703
        %v825 = vpop.permute.xlu0 %824
        %826 = vset.pattern.permute.xlu0 0
        %827 = vperm.xlu0 %826, %v705
        %v828 = vpop.permute.xlu0 %827
        %829 = vset.pattern.permute.xlu0 0
        %830 = vperm.xlu0 %829, %v707
        %v831 = vpop.permute.xlu0 %830
        %832 = vset.pattern.permute.xlu0 0
        %833 = vperm.xlu0 %832, %v709
        %v834 = vpop.permute.xlu0 %833
        %835 = vset.pattern.permute.xlu0 0
        %836 = vperm.xlu0 %835, %v711
        %v837 = vpop.permute.xlu0 %836
        %838 = vset.pattern.permute.xlu0 0
        %839 = vperm.xlu0 %838, %v713
        %v840 = vpop.permute.xlu0 %839
        %841 = vset.pattern.permute.xlu0 0
        %842 = vperm.xlu0 %841, %v715
        %v843 = vpop.permute.xlu0 %842
        %v844 = vlaneseq
        %v845 = vand.u32 %v844, 127
        %v846 = vperm.slane %v750, %v845
        %v847 = vperm.slane %v753, %v845
        %v848 = vperm.slane %v756, %v845
        %v849 = vperm.slane %v759, %v845
        %v850 = vperm.slane %v762, %v845
        %v851 = vperm.slane %v765, %v845
        %v852 = vperm.slane %v768, %v845
        %v853 = vperm.slane %v771, %v845
        %v854 = vperm.slane %v774, %v845
        %v855 = vperm.slane %v777, %v845
        %v856 = vperm.slane %v780, %v845
        %v857 = vperm.slane %v783, %v845
        %v858 = vperm.slane %v786, %v845
        %v859 = vperm.slane %v789, %v845
        %v860 = vperm.slane %v792, %v845
        %v861 = vperm.slane %v795, %v845
        %v862 = vperm.slane %v798, %v845
        %v863 = vperm.slane %v801, %v845
        %v864 = vperm.slane %v804, %v845
        %v865 = vperm.slane %v807, %v845
        %v866 = vperm.slane %v810, %v845
        %v867 = vperm.slane %v813, %v845
        %v868 = vperm.slane %v816, %v845
        %v869 = vperm.slane %v819, %v845
        %v870 = vperm.slane %v822, %v845
        %v871 = vperm.slane %v825, %v845
        %v872 = vperm.slane %v828, %v845
        %v873 = vperm.slane %v831, %v845
        %v874 = vperm.slane %v834, %v845
        %v875 = vperm.slane %v837, %v845
        %v876 = vperm.slane %v840, %v845
        %v877 = vperm.slane %v843, %v845
        %vm878 = vcmask 1041409
        %v879 = vsel %vm878, %v847, %v846
        %vm880 = vcmask 1042434
        %v881 = vsel %vm880, %v848, %v879
        %vm882 = vcmask 1043459
        %v883 = vsel %vm882, %v849, %v881
        %vm884 = vcmask 1044484
        %v885 = vsel %vm884, %v850, %v883
        %vm886 = vcmask 1045509
        %v887 = vsel %vm886, %v851, %v885
        %vm888 = vcmask 1046534
        %v889 = vsel %vm888, %v852, %v887
        %vm890 = vcmask 1047559
        %v891 = vsel %vm890, %v853, %v889
        %v892 = vsel %vm878, %v855, %v854
        %v893 = vsel %vm880, %v856, %v892
        %v894 = vsel %vm882, %v857, %v893
        %v895 = vsel %vm884, %v858, %v894
        %v896 = vsel %vm886, %v859, %v895
        %v897 = vsel %vm888, %v860, %v896
        %v898 = vsel %vm890, %v861, %v897
        %v899 = vsel %vm878, %v863, %v862
        %v900 = vsel %vm880, %v864, %v899
        %v901 = vsel %vm882, %v865, %v900
        %v902 = vsel %vm884, %v866, %v901
        %v903 = vsel %vm886, %v867, %v902
        %v904 = vsel %vm888, %v868, %v903
        %v905 = vsel %vm890, %v869, %v904
        %v906 = vsel %vm878, %v871, %v870
        %v907 = vsel %vm880, %v872, %v906
        %v908 = vsel %vm882, %v873, %v907
        %v909 = vsel %vm884, %v874, %v908
        %v910 = vsel %vm886, %v875, %v909
        %v911 = vsel %vm888, %v876, %v910
        %v912 = vsel %vm890, %v877, %v911
        %vm917 = vcmask 64512
        %918 = vst.msk [vmem:[%s168] sm:$0xff] %vm917, %v891
        %919 = vst.msk [vmem:[%s168 + $0x8] sm:$0xff] %vm917, %v898
        %920 = vst.msk [vmem:[%s168 + $0x10] sm:$0xff] %vm917, %v905
        %921 = vst.msk [vmem:[%s168 + $0x18] sm:$0xff] %vm917, %v912
        %922 = vset.pattern.permute.xlu0 1
        %923 = vperm.xlu0 %922, %v365
        %v924 = vpop.permute.xlu0 %923
        %925 = vset.pattern.permute.xlu0 1
        %926 = vperm.xlu0 %925, %v367
        %v927 = vpop.permute.xlu0 %926
        %928 = vset.pattern.permute.xlu0 1
        %929 = vperm.xlu0 %928, %v369
        %v930 = vpop.permute.xlu0 %929
        %931 = vset.pattern.permute.xlu0 1
        %932 = vperm.xlu0 %931, %v371
        %v933 = vpop.permute.xlu0 %932
        %934 = vset.pattern.permute.xlu0 1
        %935 = vperm.xlu0 %934, %v373
        %v936 = vpop.permute.xlu0 %935
        %937 = vset.pattern.permute.xlu0 1
        %938 = vperm.xlu0 %937, %v375
        %v939 = vpop.permute.xlu0 %938
        %940 = vset.pattern.permute.xlu0 1
        %941 = vperm.xlu0 %940, %v377
        %v942 = vpop.permute.xlu0 %941
        %943 = vset.pattern.permute.xlu0 1
        %944 = vperm.xlu0 %943, %v379
        %v945 = vpop.permute.xlu0 %944
        %946 = vset.pattern.permute.xlu0 1
        %947 = vperm.xlu0 %946, %v477
        %v948 = vpop.permute.xlu0 %947
        %949 = vset.pattern.permute.xlu0 1
        %950 = vperm.xlu0 %949, %v479
        %v951 = vpop.permute.xlu0 %950
        %952 = vset.pattern.permute.xlu0 1
        %953 = vperm.xlu0 %952, %v481
        %v954 = vpop.permute.xlu0 %953
        %955 = vset.pattern.permute.xlu0 1
        %956 = vperm.xlu0 %955, %v483
        %v957 = vpop.permute.xlu0 %956
        %958 = vset.pattern.permute.xlu0 1
        %959 = vperm.xlu0 %958, %v485
        %v960 = vpop.permute.xlu0 %959
        %961 = vset.pattern.permute.xlu0 1
        %962 = vperm.xlu0 %961, %v487
        %v963 = vpop.permute.xlu0 %962
        %964 = vset.pattern.permute.xlu0 1
        %965 = vperm.xlu0 %964, %v489
        %v966 = vpop.permute.xlu0 %965
        %967 = vset.pattern.permute.xlu0 1
        %968 = vperm.xlu0 %967, %v491
        %v969 = vpop.permute.xlu0 %968
        %970 = vset.pattern.permute.xlu0 1
        %971 = vperm.xlu0 %970, %v589
        %v972 = vpop.permute.xlu0 %971
        %973 = vset.pattern.permute.xlu0 1
        %974 = vperm.xlu0 %973, %v591
        %v975 = vpop.permute.xlu0 %974
        %976 = vset.pattern.permute.xlu0 1
        %977 = vperm.xlu0 %976, %v593
        %v978 = vpop.permute.xlu0 %977
        %979 = vset.pattern.permute.xlu0 1
        %980 = vperm.xlu0 %979, %v595
        %v981 = vpop.permute.xlu0 %980
        %982 = vset.pattern.permute.xlu0 1
        %983 = vperm.xlu0 %982, %v597
        %v984 = vpop.permute.xlu0 %983
        %985 = vset.pattern.permute.xlu0 1
        %986 = vperm.xlu0 %985, %v599
        %v987 = vpop.permute.xlu0 %986
        %988 = vset.pattern.permute.xlu0 1
        %989 = vperm.xlu0 %988, %v601
        %v990 = vpop.permute.xlu0 %989
        %991 = vset.pattern.permute.xlu0 1
        %992 = vperm.xlu0 %991, %v603
        %v993 = vpop.permute.xlu0 %992
        %994 = vset.pattern.permute.xlu0 1
        %995 = vperm.xlu0 %994, %v701
        %v996 = vpop.permute.xlu0 %995
        %997 = vset.pattern.permute.xlu0 1
        %998 = vperm.xlu0 %997, %v703
        %v999 = vpop.permute.xlu0 %998
        %1000 = vset.pattern.permute.xlu0 1
        %1001 = vperm.xlu0 %1000, %v705
        %v1002 = vpop.permute.xlu0 %1001
        %1003 = vset.pattern.permute.xlu0 1
        %1004 = vperm.xlu0 %1003, %v707
        %v1005 = vpop.permute.xlu0 %1004
        %1006 = vset.pattern.permute.xlu0 1
        %1007 = vperm.xlu0 %1006, %v709
        %v1008 = vpop.permute.xlu0 %1007
        %1009 = vset.pattern.permute.xlu0 1
        %1010 = vperm.xlu0 %1009, %v711
        %v1011 = vpop.permute.xlu0 %1010
        %1012 = vset.pattern.permute.xlu0 1
        %1013 = vperm.xlu0 %1012, %v713
        %v1014 = vpop.permute.xlu0 %1013
        %1015 = vset.pattern.permute.xlu0 1
        %1016 = vperm.xlu0 %1015, %v715
        %v1017 = vpop.permute.xlu0 %1016
        %v1018 = vperm.slane %v924, %v845
        %v1019 = vperm.slane %v927, %v845
        %v1020 = vperm.slane %v930, %v845
        %v1021 = vperm.slane %v933, %v845
        %v1022 = vperm.slane %v936, %v845
        %v1023 = vperm.slane %v939, %v845
        %v1024 = vperm.slane %v942, %v845
        %v1025 = vperm.slane %v945, %v845
        %v1026 = vperm.slane %v948, %v845
        %v1027 = vperm.slane %v951, %v845
        %v1028 = vperm.slane %v954, %v845
        %v1029 = vperm.slane %v957, %v845
        %v1030 = vperm.slane %v960, %v845
        %v1031 = vperm.slane %v963, %v845
        %v1032 = vperm.slane %v966, %v845
        %v1033 = vperm.slane %v969, %v845
        %v1034 = vperm.slane %v972, %v845
        %v1035 = vperm.slane %v975, %v845
        %v1036 = vperm.slane %v978, %v845
        %v1037 = vperm.slane %v981, %v845
        %v1038 = vperm.slane %v984, %v845
        %v1039 = vperm.slane %v987, %v845
        %v1040 = vperm.slane %v990, %v845
        %v1041 = vperm.slane %v993, %v845
        %v1042 = vperm.slane %v996, %v845
        %v1043 = vperm.slane %v999, %v845
        %v1044 = vperm.slane %v1002, %v845
        %v1045 = vperm.slane %v1005, %v845
        %v1046 = vperm.slane %v1008, %v845
        %v1047 = vperm.slane %v1011, %v845
        %v1048 = vperm.slane %v1014, %v845
        %v1049 = vperm.slane %v1017, %v845
        %v1050 = vsel %vm878, %v1019, %v1018
        %v1051 = vsel %vm880, %v1020, %v1050
        %v1052 = vsel %vm882, %v1021, %v1051
        %v1053 = vsel %vm884, %v1022, %v1052
        %v1054 = vsel %vm886, %v1023, %v1053
        %v1055 = vsel %vm888, %v1024, %v1054
        %v1056 = vsel %vm890, %v1025, %v1055
        %v1057 = vsel %vm878, %v1027, %v1026
        %v1058 = vsel %vm880, %v1028, %v1057
        %v1059 = vsel %vm882, %v1029, %v1058
        %v1060 = vsel %vm884, %v1030, %v1059
        %v1061 = vsel %vm886, %v1031, %v1060
        %v1062 = vsel %vm888, %v1032, %v1061
        %v1063 = vsel %vm890, %v1033, %v1062
        %v1064 = vsel %vm878, %v1035, %v1034
        %v1065 = vsel %vm880, %v1036, %v1064
        %v1066 = vsel %vm882, %v1037, %v1065
        %v1067 = vsel %vm884, %v1038, %v1066
        %v1068 = vsel %vm886, %v1039, %v1067
        %v1069 = vsel %vm888, %v1040, %v1068
        %v1070 = vsel %vm890, %v1041, %v1069
        %v1071 = vsel %vm878, %v1043, %v1042
        %v1072 = vsel %vm880, %v1044, %v1071
        %v1073 = vsel %vm882, %v1045, %v1072
        %v1074 = vsel %vm884, %v1046, %v1073
        %v1075 = vsel %vm886, %v1047, %v1074
        %v1076 = vsel %vm888, %v1048, %v1075
        %v1077 = vsel %vm890, %v1049, %v1076
        %s1082 = scalar_lea.vmem %s168, 32 [#allocation5]
        %1083 = vst.msk [vmem:[%s1082] sm:$0xff] %vm917, %v1056
        %1084 = vst.msk [vmem:[%s1082 + $0x8] sm:$0xff] %vm917, %v1063
        %1085 = vst.msk [vmem:[%s1082 + $0x10] sm:$0xff] %vm917, %v1070
        %1086 = vst.msk [vmem:[%s1082 + $0x18] sm:$0xff] %vm917, %v1077
        %s1087 = scalar_lea.vmem %s149, 1 [#allocation2]
        %v1088 = vld [vmem:[%s1087] ss:$2 sm:$0xff]
        %s1089 = scalar_lea.vmem %s149, 17 [#allocation2]
        %v1090 = vld [vmem:[%s1089] ss:$2 sm:$0xff]
        %s1091 = scalar_lea.vmem %s149, 33 [#allocation2]
        %v1092 = vld [vmem:[%s1091] ss:$2 sm:$0xff]
        %s1093 = scalar_lea.vmem %s149, 49 [#allocation2]
        %v1094 = vld [vmem:[%s1093] ss:$2 sm:$0xff]
        %1099 = vrot.lane.b32.xlu0 %v1088, 126
        %v1100 = vpop.permute.xlu0 %1099
        %1101 = vrot.lane.b32.xlu0 %v1090, 126
        %v1102 = vpop.permute.xlu0 %1101
        %1103 = vrot.lane.b32.xlu0 %v1092, 126
        %v1104 = vpop.permute.xlu0 %1103
        %1105 = vrot.lane.b32.xlu0 %v1094, 126
        %v1106 = vpop.permute.xlu0 %1105
        %1111 = vrot.lane.b32.xlu0 %v1088, 124
        %v1112 = vpop.permute.xlu0 %1111
        %1113 = vrot.lane.b32.xlu0 %v1090, 124
        %v1114 = vpop.permute.xlu0 %1113
        %1115 = vrot.lane.b32.xlu0 %v1092, 124
        %v1116 = vpop.permute.xlu0 %1115
        %1117 = vrot.lane.b32.xlu0 %v1094, 124
        %v1118 = vpop.permute.xlu0 %1117
        %1123 = vrot.lane.b32.xlu0 %v1088, 122
        %v1124 = vpop.permute.xlu0 %1123
        %1125 = vrot.lane.b32.xlu0 %v1090, 122
        %v1126 = vpop.permute.xlu0 %1125
        %1127 = vrot.lane.b32.xlu0 %v1092, 122
        %v1128 = vpop.permute.xlu0 %1127
        %1129 = vrot.lane.b32.xlu0 %v1094, 122
        %v1130 = vpop.permute.xlu0 %1129
        %1135 = vrot.lane.b32.xlu0 %v1088, 120
        %v1136 = vpop.permute.xlu0 %1135
        %1137 = vrot.lane.b32.xlu0 %v1090, 120
        %v1138 = vpop.permute.xlu0 %1137
        %1139 = vrot.lane.b32.xlu0 %v1092, 120
        %v1140 = vpop.permute.xlu0 %1139
        %1141 = vrot.lane.b32.xlu0 %v1094, 120
        %v1142 = vpop.permute.xlu0 %1141
        %1147 = vrot.lane.b32.xlu0 %v1088, 118
        %v1148 = vpop.permute.xlu0 %1147
        %1149 = vrot.lane.b32.xlu0 %v1090, 118
        %v1150 = vpop.permute.xlu0 %1149
        %1151 = vrot.lane.b32.xlu0 %v1092, 118
        %v1152 = vpop.permute.xlu0 %1151
        %1153 = vrot.lane.b32.xlu0 %v1094, 118
        %v1154 = vpop.permute.xlu0 %1153
        %1159 = vrot.lane.b32.xlu0 %v1088, 116
        %v1160 = vpop.permute.xlu0 %1159
        %1161 = vrot.lane.b32.xlu0 %v1090, 116
        %v1162 = vpop.permute.xlu0 %1161
        %1163 = vrot.lane.b32.xlu0 %v1092, 116
        %v1164 = vpop.permute.xlu0 %1163
        %1165 = vrot.lane.b32.xlu0 %v1094, 116
        %v1166 = vpop.permute.xlu0 %1165
        %1171 = vrot.lane.b32.xlu0 %v1088, 114
        %v1172 = vpop.permute.xlu0 %1171
        %1173 = vrot.lane.b32.xlu0 %v1090, 114
        %v1174 = vpop.permute.xlu0 %1173
        %1175 = vrot.lane.b32.xlu0 %v1092, 114
        %v1176 = vpop.permute.xlu0 %1175
        %1177 = vrot.lane.b32.xlu0 %v1094, 114
        %v1178 = vpop.permute.xlu0 %1177
        %v1183 = vrot.slane %v1112, 4
        %v1184 = vsel %vm268, %v1183, %v1088
        %v1185 = vrot.slane %v1088, 4
        %v1186 = vsel %vm268, %v1112, %v1185
        %v1188 = vunpack.c.l.s4 1983009808
        %v1189 = vunpack.c.0.s8 %v1188
        %v1190 = vperm.slane %v1184, %v1189
        %v1192 = vunpack.c.l.s4 1983009808
        %v1193 = vunpack.c.0.s8 %v1192
        %v1194 = vperm.slane %v1186, %v1193
        %v1195 = vrot.slane %v1124, 4
        %v1196 = vsel %vm268, %v1195, %v1100
        %v1197 = vrot.slane %v1100, 4
        %v1198 = vsel %vm268, %v1124, %v1197
        %v1200 = vunpack.c.l.s4 1983009808
        %v1201 = vunpack.c.0.s8 %v1200
        %v1202 = vperm.slane %v1196, %v1201
        %v1204 = vunpack.c.l.s4 1983009808
        %v1205 = vunpack.c.0.s8 %v1204
        %v1206 = vperm.slane %v1198, %v1205
        %v1207 = vrot.slane %v1160, 4
        %v1208 = vsel %vm268, %v1207, %v1136
        %v1209 = vrot.slane %v1136, 4
        %v1210 = vsel %vm268, %v1160, %v1209
        %v1212 = vunpack.c.l.s4 1983009808
        %v1213 = vunpack.c.0.s8 %v1212
        %v1214 = vperm.slane %v1208, %v1213
        %v1216 = vunpack.c.l.s4 1983009808
        %v1217 = vunpack.c.0.s8 %v1216
        %v1218 = vperm.slane %v1210, %v1217
        %v1219 = vrot.slane %v1172, 4
        %v1220 = vsel %vm268, %v1219, %v1148
        %v1221 = vrot.slane %v1148, 4
        %v1222 = vsel %vm268, %v1172, %v1221
        %v1224 = vunpack.c.l.s4 1983009808
        %v1225 = vunpack.c.0.s8 %v1224
        %v1226 = vperm.slane %v1220, %v1225
        %v1228 = vunpack.c.l.s4 1983009808
        %v1229 = vunpack.c.0.s8 %v1228
        %v1230 = vperm.slane %v1222, %v1229
        %v1231 = vrot.slane %v1202, 4
        %v1232 = vsel %vm268, %v1231, %v1190
        %v1233 = vrot.slane %v1190, 4
        %v1234 = vsel %vm268, %v1202, %v1233
        %v1236 = vunpack.c.l.s4 1934713408
        %v1237 = vunpack.c.0.s8 %v1236
        %v1238 = vperm.slane %v1232, %v1237
        %v1240 = vunpack.c.l.s4 1934713408
        %v1241 = vunpack.c.0.s8 %v1240
        %v1242 = vperm.slane %v1234, %v1241
        %v1243 = vrot.slane %v1206, 4
        %v1244 = vsel %vm268, %v1243, %v1194
        %v1245 = vrot.slane %v1194, 4
        %v1246 = vsel %vm268, %v1206, %v1245
        %v1248 = vunpack.c.l.s4 1934713408
        %v1249 = vunpack.c.0.s8 %v1248
        %v1250 = vperm.slane %v1244, %v1249
        %v1252 = vunpack.c.l.s4 1934713408
        %v1253 = vunpack.c.0.s8 %v1252
        %v1254 = vperm.slane %v1246, %v1253
        %v1255 = vrot.slane %v1226, 4
        %v1256 = vsel %vm268, %v1255, %v1214
        %v1257 = vrot.slane %v1214, 4
        %v1258 = vsel %vm268, %v1226, %v1257
        %v1260 = vunpack.c.l.s4 1934713408
        %v1261 = vunpack.c.0.s8 %v1260
        %v1262 = vperm.slane %v1256, %v1261
        %v1264 = vunpack.c.l.s4 1934713408
        %v1265 = vunpack.c.0.s8 %v1264
        %v1266 = vperm.slane %v1258, %v1265
        %v1267 = vrot.slane %v1230, 4
        %v1268 = vsel %vm268, %v1267, %v1218
        %v1269 = vrot.slane %v1218, 4
        %v1270 = vsel %vm268, %v1230, %v1269
        %v1272 = vunpack.c.l.s4 1934713408
        %v1273 = vunpack.c.0.s8 %v1272
        %v1274 = vperm.slane %v1268, %v1273
        %v1276 = vunpack.c.l.s4 1934713408
        %v1277 = vunpack.c.0.s8 %v1276
        %v1278 = vperm.slane %v1270, %v1277
        %v1279 = vrot.slane %v1262, 4
        %v1280 = vsel %vm268, %v1279, %v1238
        %v1281 = vrot.slane %v1238, 4
        %v1282 = vsel %vm268, %v1262, %v1281
        %v1283 = vrot.slane %v1266, 4
        %v1284 = vsel %vm268, %v1283, %v1242
        %v1285 = vrot.slane %v1242, 4
        %v1286 = vsel %vm268, %v1266, %v1285
        %v1287 = vrot.slane %v1274, 4
        %v1288 = vsel %vm268, %v1287, %v1250
        %v1289 = vrot.slane %v1250, 4
        %v1290 = vsel %vm268, %v1274, %v1289
        %v1291 = vrot.slane %v1278, 4
        %v1292 = vsel %vm268, %v1291, %v1254
        %v1293 = vrot.slane %v1254, 4
        %v1294 = vsel %vm268, %v1278, %v1293
        %v1295 = vrot.slane %v1114, 4
        %v1296 = vsel %vm268, %v1295, %v1090
        %v1297 = vrot.slane %v1090, 4
        %v1298 = vsel %vm268, %v1114, %v1297
        %v1300 = vunpack.c.l.s4 1983009808
        %v1301 = vunpack.c.0.s8 %v1300
        %v1302 = vperm.slane %v1296, %v1301
        %v1304 = vunpack.c.l.s4 1983009808
        %v1305 = vunpack.c.0.s8 %v1304
        %v1306 = vperm.slane %v1298, %v1305
        %v1307 = vrot.slane %v1126, 4
        %v1308 = vsel %vm268, %v1307, %v1102
        %v1309 = vrot.slane %v1102, 4
        %v1310 = vsel %vm268, %v1126, %v1309
        %v1312 = vunpack.c.l.s4 1983009808
        %v1313 = vunpack.c.0.s8 %v1312
        %v1314 = vperm.slane %v1308, %v1313
        %v1316 = vunpack.c.l.s4 1983009808
        %v1317 = vunpack.c.0.s8 %v1316
        %v1318 = vperm.slane %v1310, %v1317
        %v1319 = vrot.slane %v1162, 4
        %v1320 = vsel %vm268, %v1319, %v1138
        %v1321 = vrot.slane %v1138, 4
        %v1322 = vsel %vm268, %v1162, %v1321
        %v1324 = vunpack.c.l.s4 1983009808
        %v1325 = vunpack.c.0.s8 %v1324
        %v1326 = vperm.slane %v1320, %v1325
        %v1328 = vunpack.c.l.s4 1983009808
        %v1329 = vunpack.c.0.s8 %v1328
        %v1330 = vperm.slane %v1322, %v1329
        %v1331 = vrot.slane %v1174, 4
        %v1332 = vsel %vm268, %v1331, %v1150
        %v1333 = vrot.slane %v1150, 4
        %v1334 = vsel %vm268, %v1174, %v1333
        %v1336 = vunpack.c.l.s4 1983009808
        %v1337 = vunpack.c.0.s8 %v1336
        %v1338 = vperm.slane %v1332, %v1337
        %v1340 = vunpack.c.l.s4 1983009808
        %v1341 = vunpack.c.0.s8 %v1340
        %v1342 = vperm.slane %v1334, %v1341
        %v1343 = vrot.slane %v1314, 4
        %v1344 = vsel %vm268, %v1343, %v1302
        %v1345 = vrot.slane %v1302, 4
        %v1346 = vsel %vm268, %v1314, %v1345
        %v1348 = vunpack.c.l.s4 1934713408
        %v1349 = vunpack.c.0.s8 %v1348
        %v1350 = vperm.slane %v1344, %v1349
        %v1352 = vunpack.c.l.s4 1934713408
        %v1353 = vunpack.c.0.s8 %v1352
        %v1354 = vperm.slane %v1346, %v1353
        %v1355 = vrot.slane %v1318, 4
        %v1356 = vsel %vm268, %v1355, %v1306
        %v1357 = vrot.slane %v1306, 4
        %v1358 = vsel %vm268, %v1318, %v1357
        %v1360 = vunpack.c.l.s4 1934713408
        %v1361 = vunpack.c.0.s8 %v1360
        %v1362 = vperm.slane %v1356, %v1361
        %v1364 = vunpack.c.l.s4 1934713408
        %v1365 = vunpack.c.0.s8 %v1364
        %v1366 = vperm.slane %v1358, %v1365
        %v1367 = vrot.slane %v1338, 4
        %v1368 = vsel %vm268, %v1367, %v1326
        %v1369 = vrot.slane %v1326, 4
        %v1370 = vsel %vm268, %v1338, %v1369
        %v1372 = vunpack.c.l.s4 1934713408
        %v1373 = vunpack.c.0.s8 %v1372
        %v1374 = vperm.slane %v1368, %v1373
        %v1376 = vunpack.c.l.s4 1934713408
        %v1377 = vunpack.c.0.s8 %v1376
        %v1378 = vperm.slane %v1370, %v1377
        %v1379 = vrot.slane %v1342, 4
        %v1380 = vsel %vm268, %v1379, %v1330
        %v1381 = vrot.slane %v1330, 4
        %v1382 = vsel %vm268, %v1342, %v1381
        %v1384 = vunpack.c.l.s4 1934713408
        %v1385 = vunpack.c.0.s8 %v1384
        %v1386 = vperm.slane %v1380, %v1385
        %v1388 = vunpack.c.l.s4 1934713408
        %v1389 = vunpack.c.0.s8 %v1388
        %v1390 = vperm.slane %v1382, %v1389
        %v1391 = vrot.slane %v1374, 4
        %v1392 = vsel %vm268, %v1391, %v1350
        %v1393 = vrot.slane %v1350, 4
        %v1394 = vsel %vm268, %v1374, %v1393
        %v1395 = vrot.slane %v1378, 4
        %v1396 = vsel %vm268, %v1395, %v1354
        %v1397 = vrot.slane %v1354, 4
        %v1398 = vsel %vm268, %v1378, %v1397
        %v1399 = vrot.slane %v1386, 4
        %v1400 = vsel %vm268, %v1399, %v1362
        %v1401 = vrot.slane %v1362, 4
        %v1402 = vsel %vm268, %v1386, %v1401
        %v1403 = vrot.slane %v1390, 4
        %v1404 = vsel %vm268, %v1403, %v1366
        %v1405 = vrot.slane %v1366, 4
        %v1406 = vsel %vm268, %v1390, %v1405
        %v1407 = vrot.slane %v1116, 4
        %v1408 = vsel %vm268, %v1407, %v1092
        %v1409 = vrot.slane %v1092, 4
        %v1410 = vsel %vm268, %v1116, %v1409
        %v1412 = vunpack.c.l.s4 1983009808
        %v1413 = vunpack.c.0.s8 %v1412
        %v1414 = vperm.slane %v1408, %v1413
        %v1416 = vunpack.c.l.s4 1983009808
        %v1417 = vunpack.c.0.s8 %v1416
        %v1418 = vperm.slane %v1410, %v1417
        %v1419 = vrot.slane %v1128, 4
        %v1420 = vsel %vm268, %v1419, %v1104
        %v1421 = vrot.slane %v1104, 4
        %v1422 = vsel %vm268, %v1128, %v1421
        %v1424 = vunpack.c.l.s4 1983009808
        %v1425 = vunpack.c.0.s8 %v1424
        %v1426 = vperm.slane %v1420, %v1425
        %v1428 = vunpack.c.l.s4 1983009808
        %v1429 = vunpack.c.0.s8 %v1428
        %v1430 = vperm.slane %v1422, %v1429
        %v1431 = vrot.slane %v1164, 4
        %v1432 = vsel %vm268, %v1431, %v1140
        %v1433 = vrot.slane %v1140, 4
        %v1434 = vsel %vm268, %v1164, %v1433
        %v1436 = vunpack.c.l.s4 1983009808
        %v1437 = vunpack.c.0.s8 %v1436
        %v1438 = vperm.slane %v1432, %v1437
        %v1440 = vunpack.c.l.s4 1983009808
        %v1441 = vunpack.c.0.s8 %v1440
        %v1442 = vperm.slane %v1434, %v1441
        %v1443 = vrot.slane %v1176, 4
        %v1444 = vsel %vm268, %v1443, %v1152
        %v1445 = vrot.slane %v1152, 4
        %v1446 = vsel %vm268, %v1176, %v1445
        %v1448 = vunpack.c.l.s4 1983009808
        %v1449 = vunpack.c.0.s8 %v1448
        %v1450 = vperm.slane %v1444, %v1449
        %v1452 = vunpack.c.l.s4 1983009808
        %v1453 = vunpack.c.0.s8 %v1452
        %v1454 = vperm.slane %v1446, %v1453
        %v1455 = vrot.slane %v1426, 4
        %v1456 = vsel %vm268, %v1455, %v1414
        %v1457 = vrot.slane %v1414, 4
        %v1458 = vsel %vm268, %v1426, %v1457
        %v1460 = vunpack.c.l.s4 1934713408
        %v1461 = vunpack.c.0.s8 %v1460
        %v1462 = vperm.slane %v1456, %v1461
        %v1464 = vunpack.c.l.s4 1934713408
        %v1465 = vunpack.c.0.s8 %v1464
        %v1466 = vperm.slane %v1458, %v1465
        %v1467 = vrot.slane %v1430, 4
        %v1468 = vsel %vm268, %v1467, %v1418
        %v1469 = vrot.slane %v1418, 4
        %v1470 = vsel %vm268, %v1430, %v1469
        %v1472 = vunpack.c.l.s4 1934713408
        %v1473 = vunpack.c.0.s8 %v1472
        %v1474 = vperm.slane %v1468, %v1473
        %v1476 = vunpack.c.l.s4 1934713408
        %v1477 = vunpack.c.0.s8 %v1476
        %v1478 = vperm.slane %v1470, %v1477
        %v1479 = vrot.slane %v1450, 4
        %v1480 = vsel %vm268, %v1479, %v1438
        %v1481 = vrot.slane %v1438, 4
        %v1482 = vsel %vm268, %v1450, %v1481
        %v1484 = vunpack.c.l.s4 1934713408
        %v1485 = vunpack.c.0.s8 %v1484
        %v1486 = vperm.slane %v1480, %v1485
        %v1488 = vunpack.c.l.s4 1934713408
        %v1489 = vunpack.c.0.s8 %v1488
        %v1490 = vperm.slane %v1482, %v1489
        %v1491 = vrot.slane %v1454, 4
        %v1492 = vsel %vm268, %v1491, %v1442
        %v1493 = vrot.slane %v1442, 4
        %v1494 = vsel %vm268, %v1454, %v1493
        %v1496 = vunpack.c.l.s4 1934713408
        %v1497 = vunpack.c.0.s8 %v1496
        %v1498 = vperm.slane %v1492, %v1497
        %v1500 = vunpack.c.l.s4 1934713408
        %v1501 = vunpack.c.0.s8 %v1500
        %v1502 = vperm.slane %v1494, %v1501
        %v1503 = vrot.slane %v1486, 4
        %v1504 = vsel %vm268, %v1503, %v1462
        %v1505 = vrot.slane %v1462, 4
        %v1506 = vsel %vm268, %v1486, %v1505
        %v1507 = vrot.slane %v1490, 4
        %v1508 = vsel %vm268, %v1507, %v1466
        %v1509 = vrot.slane %v1466, 4
        %v1510 = vsel %vm268, %v1490, %v1509
        %v1511 = vrot.slane %v1498, 4
        %v1512 = vsel %vm268, %v1511, %v1474
        %v1513 = vrot.slane %v1474, 4
        %v1514 = vsel %vm268, %v1498, %v1513
        %v1515 = vrot.slane %v1502, 4
        %v1516 = vsel %vm268, %v1515, %v1478
        %v1517 = vrot.slane %v1478, 4
        %v1518 = vsel %vm268, %v1502, %v1517
        %v1519 = vrot.slane %v1118, 4
        %v1520 = vsel %vm268, %v1519, %v1094
        %v1521 = vrot.slane %v1094, 4
        %v1522 = vsel %vm268, %v1118, %v1521
        %v1524 = vunpack.c.l.s4 1983009808
        %v1525 = vunpack.c.0.s8 %v1524
        %v1526 = vperm.slane %v1520, %v1525
        %v1528 = vunpack.c.l.s4 1983009808
        %v1529 = vunpack.c.0.s8 %v1528
        %v1530 = vperm.slane %v1522, %v1529
        %v1531 = vrot.slane %v1130, 4
        %v1532 = vsel %vm268, %v1531, %v1106
        %v1533 = vrot.slane %v1106, 4
        %v1534 = vsel %vm268, %v1130, %v1533
        %v1536 = vunpack.c.l.s4 1983009808
        %v1537 = vunpack.c.0.s8 %v1536
        %v1538 = vperm.slane %v1532, %v1537
        %v1540 = vunpack.c.l.s4 1983009808
        %v1541 = vunpack.c.0.s8 %v1540
        %v1542 = vperm.slane %v1534, %v1541
        %v1543 = vrot.slane %v1166, 4
        %v1544 = vsel %vm268, %v1543, %v1142
        %v1545 = vrot.slane %v1142, 4
        %v1546 = vsel %vm268, %v1166, %v1545
        %v1548 = vunpack.c.l.s4 1983009808
        %v1549 = vunpack.c.0.s8 %v1548
        %v1550 = vperm.slane %v1544, %v1549
        %v1552 = vunpack.c.l.s4 1983009808
        %v1553 = vunpack.c.0.s8 %v1552
        %v1554 = vperm.slane %v1546, %v1553
        %v1555 = vrot.slane %v1178, 4
        %v1556 = vsel %vm268, %v1555, %v1154
        %v1557 = vrot.slane %v1154, 4
        %v1558 = vsel %vm268, %v1178, %v1557
        %v1560 = vunpack.c.l.s4 1983009808
        %v1561 = vunpack.c.0.s8 %v1560
        %v1562 = vperm.slane %v1556, %v1561
        %v1564 = vunpack.c.l.s4 1983009808
        %v1565 = vunpack.c.0.s8 %v1564
        %v1566 = vperm.slane %v1558, %v1565
        %v1567 = vrot.slane %v1538, 4
        %v1568 = vsel %vm268, %v1567, %v1526
        %v1569 = vrot.slane %v1526, 4
        %v1570 = vsel %vm268, %v1538, %v1569
        %v1572 = vunpack.c.l.s4 1934713408
        %v1573 = vunpack.c.0.s8 %v1572
        %v1574 = vperm.slane %v1568, %v1573
        %v1576 = vunpack.c.l.s4 1934713408
        %v1577 = vunpack.c.0.s8 %v1576
        %v1578 = vperm.slane %v1570, %v1577
        %v1579 = vrot.slane %v1542, 4
        %v1580 = vsel %vm268, %v1579, %v1530
        %v1581 = vrot.slane %v1530, 4
        %v1582 = vsel %vm268, %v1542, %v1581
        %v1584 = vunpack.c.l.s4 1934713408
        %v1585 = vunpack.c.0.s8 %v1584
        %v1586 = vperm.slane %v1580, %v1585
        %v1588 = vunpack.c.l.s4 1934713408
        %v1589 = vunpack.c.0.s8 %v1588
        %v1590 = vperm.slane %v1582, %v1589
        %v1591 = vrot.slane %v1562, 4
        %v1592 = vsel %vm268, %v1591, %v1550
        %v1593 = vrot.slane %v1550, 4
        %v1594 = vsel %vm268, %v1562, %v1593
        %v1596 = vunpack.c.l.s4 1934713408
        %v1597 = vunpack.c.0.s8 %v1596
        %v1598 = vperm.slane %v1592, %v1597
        %v1600 = vunpack.c.l.s4 1934713408
        %v1601 = vunpack.c.0.s8 %v1600
        %v1602 = vperm.slane %v1594, %v1601
        %v1603 = vrot.slane %v1566, 4
        %v1604 = vsel %vm268, %v1603, %v1554
        %v1605 = vrot.slane %v1554, 4
        %v1606 = vsel %vm268, %v1566, %v1605
        %v1608 = vunpack.c.l.s4 1934713408
        %v1609 = vunpack.c.0.s8 %v1608
        %v1610 = vperm.slane %v1604, %v1609
        %v1612 = vunpack.c.l.s4 1934713408
        %v1613 = vunpack.c.0.s8 %v1612
        %v1614 = vperm.slane %v1606, %v1613
        %v1615 = vrot.slane %v1598, 4
        %v1616 = vsel %vm268, %v1615, %v1574
        %v1617 = vrot.slane %v1574, 4
        %v1618 = vsel %vm268, %v1598, %v1617
        %v1619 = vrot.slane %v1602, 4
        %v1620 = vsel %vm268, %v1619, %v1578
        %v1621 = vrot.slane %v1578, 4
        %v1622 = vsel %vm268, %v1602, %v1621
        %v1623 = vrot.slane %v1610, 4
        %v1624 = vsel %vm268, %v1623, %v1586
        %v1625 = vrot.slane %v1586, 4
        %v1626 = vsel %vm268, %v1610, %v1625
        %v1627 = vrot.slane %v1614, 4
        %v1628 = vsel %vm268, %v1627, %v1590
        %v1629 = vrot.slane %v1590, 4
        %v1630 = vsel %vm268, %v1614, %v1629
        %1663 = vset.pattern.permute.xlu0 0
        %1664 = vperm.xlu0 %1663, %v1280
        %v1665 = vpop.permute.xlu0 %1664
        %1666 = vset.pattern.permute.xlu0 0
        %1667 = vperm.xlu0 %1666, %v1282
        %v1668 = vpop.permute.xlu0 %1667
        %1669 = vset.pattern.permute.xlu0 0
        %1670 = vperm.xlu0 %1669, %v1284
        %v1671 = vpop.permute.xlu0 %1670
        %1672 = vset.pattern.permute.xlu0 0
        %1673 = vperm.xlu0 %1672, %v1286
        %v1674 = vpop.permute.xlu0 %1673
        %1675 = vset.pattern.permute.xlu0 0
        %1676 = vperm.xlu0 %1675, %v1288
        %v1677 = vpop.permute.xlu0 %1676
        %1678 = vset.pattern.permute.xlu0 0
        %1679 = vperm.xlu0 %1678, %v1290
        %v1680 = vpop.permute.xlu0 %1679
        %1681 = vset.pattern.permute.xlu0 0
        %1682 = vperm.xlu0 %1681, %v1292
        %v1683 = vpop.permute.xlu0 %1682
        %1684 = vset.pattern.permute.xlu0 0
        %1685 = vperm.xlu0 %1684, %v1294
        %v1686 = vpop.permute.xlu0 %1685
        %1687 = vset.pattern.permute.xlu0 0
        %1688 = vperm.xlu0 %1687, %v1392
        %v1689 = vpop.permute.xlu0 %1688
        %1690 = vset.pattern.permute.xlu0 0
        %1691 = vperm.xlu0 %1690, %v1394
        %v1692 = vpop.permute.xlu0 %1691
        %1693 = vset.pattern.permute.xlu0 0
        %1694 = vperm.xlu0 %1693, %v1396
        %v1695 = vpop.permute.xlu0 %1694
        %1696 = vset.pattern.permute.xlu0 0
        %1697 = vperm.xlu0 %1696, %v1398
        %v1698 = vpop.permute.xlu0 %1697
        %1699 = vset.pattern.permute.xlu0 0
        %1700 = vperm.xlu0 %1699, %v1400
        %v1701 = vpop.permute.xlu0 %1700
        %1702 = vset.pattern.permute.xlu0 0
        %1703 = vperm.xlu0 %1702, %v1402
        %v1704 = vpop.permute.xlu0 %1703
        %1705 = vset.pattern.permute.xlu0 0
        %1706 = vperm.xlu0 %1705, %v1404
        %v1707 = vpop.permute.xlu0 %1706
        %1708 = vset.pattern.permute.xlu0 0
        %1709 = vperm.xlu0 %1708, %v1406
        %v1710 = vpop.permute.xlu0 %1709
        %1711 = vset.pattern.permute.xlu0 0
        %1712 = vperm.xlu0 %1711, %v1504
        %v1713 = vpop.permute.xlu0 %1712
        %1714 = vset.pattern.permute.xlu0 0
        %1715 = vperm.xlu0 %1714, %v1506
        %v1716 = vpop.permute.xlu0 %1715
        %1717 = vset.pattern.permute.xlu0 0
        %1718 = vperm.xlu0 %1717, %v1508
        %v1719 = vpop.permute.xlu0 %1718
        %1720 = vset.pattern.permute.xlu0 0
        %1721 = vperm.xlu0 %1720, %v1510
        %v1722 = vpop.permute.xlu0 %1721
        %1723 = vset.pattern.permute.xlu0 0
        %1724 = vperm.xlu0 %1723, %v1512
        %v1725 = vpop.permute.xlu0 %1724
        %1726 = vset.pattern.permute.xlu0 0
        %1727 = vperm.xlu0 %1726, %v1514
        %v1728 = vpop.permute.xlu0 %1727
        %1729 = vset.pattern.permute.xlu0 0
        %1730 = vperm.xlu0 %1729, %v1516
        %v1731 = vpop.permute.xlu0 %1730
        %1732 = vset.pattern.permute.xlu0 0
        %1733 = vperm.xlu0 %1732, %v1518
        %v1734 = vpop.permute.xlu0 %1733
        %1735 = vset.pattern.permute.xlu0 0
        %1736 = vperm.xlu0 %1735, %v1616
        %v1737 = vpop.permute.xlu0 %1736
        %1738 = vset.pattern.permute.xlu0 0
        %1739 = vperm.xlu0 %1738, %v1618
        %v1740 = vpop.permute.xlu0 %1739
        %1741 = vset.pattern.permute.xlu0 0
        %1742 = vperm.xlu0 %1741, %v1620
        %v1743 = vpop.permute.xlu0 %1742
        %1744 = vset.pattern.permute.xlu0 0
        %1745 = vperm.xlu0 %1744, %v1622
        %v1746 = vpop.permute.xlu0 %1745
        %1747 = vset.pattern.permute.xlu0 0
        %1748 = vperm.xlu0 %1747, %v1624
        %v1749 = vpop.permute.xlu0 %1748
        %1750 = vset.pattern.permute.xlu0 0
        %1751 = vperm.xlu0 %1750, %v1626
        %v1752 = vpop.permute.xlu0 %1751
        %1753 = vset.pattern.permute.xlu0 0
        %1754 = vperm.xlu0 %1753, %v1628
        %v1755 = vpop.permute.xlu0 %1754
        %1756 = vset.pattern.permute.xlu0 0
        %1757 = vperm.xlu0 %1756, %v1630
        %v1758 = vpop.permute.xlu0 %1757
        %v1759 = vperm.slane %v1665, %v845
        %v1760 = vperm.slane %v1668, %v845
        %v1761 = vperm.slane %v1671, %v845
        %v1762 = vperm.slane %v1674, %v845
        %v1763 = vperm.slane %v1677, %v845
        %v1764 = vperm.slane %v1680, %v845
        %v1765 = vperm.slane %v1683, %v845
        %v1766 = vperm.slane %v1686, %v845
        %v1767 = vperm.slane %v1689, %v845
        %v1768 = vperm.slane %v1692, %v845
        %v1769 = vperm.slane %v1695, %v845
        %v1770 = vperm.slane %v1698, %v845
        %v1771 = vperm.slane %v1701, %v845
        %v1772 = vperm.slane %v1704, %v845
        %v1773 = vperm.slane %v1707, %v845
        %v1774 = vperm.slane %v1710, %v845
        %v1775 = vperm.slane %v1713, %v845
        %v1776 = vperm.slane %v1716, %v845
        %v1777 = vperm.slane %v1719, %v845
        %v1778 = vperm.slane %v1722, %v845
        %v1779 = vperm.slane %v1725, %v845
        %v1780 = vperm.slane %v1728, %v845
        %v1781 = vperm.slane %v1731, %v845
        %v1782 = vperm.slane %v1734, %v845
        %v1783 = vperm.slane %v1737, %v845
        %v1784 = vperm.slane %v1740, %v845
        %v1785 = vperm.slane %v1743, %v845
        %v1786 = vperm.slane %v1746, %v845
        %v1787 = vperm.slane %v1749, %v845
        %v1788 = vperm.slane %v1752, %v845
        %v1789 = vperm.slane %v1755, %v845
        %v1790 = vperm.slane %v1758, %v845
        %v1791 = vsel %vm878, %v1760, %v1759
        %v1792 = vsel %vm880, %v1761, %v1791
        %v1793 = vsel %vm882, %v1762, %v1792
        %v1794 = vsel %vm884, %v1763, %v1793
        %v1795 = vsel %vm886, %v1764, %v1794
        %v1796 = vsel %vm888, %v1765, %v1795
        %v1797 = vsel %vm890, %v1766, %v1796
        %v1798 = vsel %vm878, %v1768, %v1767
        %v1799 = vsel %vm880, %v1769, %v1798
        %v1800 = vsel %vm882, %v1770, %v1799
        %v1801 = vsel %vm884, %v1771, %v1800
        %v1802 = vsel %vm886, %v1772, %v1801
        %v1803 = vsel %vm888, %v1773, %v1802
        %v1804 = vsel %vm890, %v1774, %v1803
        %v1805 = vsel %vm878, %v1776, %v1775
        %v1806 = vsel %vm880, %v1777, %v1805
        %v1807 = vsel %vm882, %v1778, %v1806
        %v1808 = vsel %vm884, %v1779, %v1807
        %v1809 = vsel %vm886, %v1780, %v1808
        %v1810 = vsel %vm888, %v1781, %v1809
        %v1811 = vsel %vm890, %v1782, %v1810
        %v1812 = vsel %vm878, %v1784, %v1783
        %v1813 = vsel %vm880, %v1785, %v1812
        %v1814 = vsel %vm882, %v1786, %v1813
        %v1815 = vsel %vm884, %v1787, %v1814
        %v1816 = vsel %vm886, %v1788, %v1815
        %v1817 = vsel %vm888, %v1789, %v1816
        %v1818 = vsel %vm890, %v1790, %v1817
        %s1823 = scalar_lea.vmem %s168, 64 [#allocation5]
        %1824 = vst.msk [vmem:[%s1823] sm:$0xff] %vm917, %v1797
        %1825 = vst.msk [vmem:[%s1823 + $0x8] sm:$0xff] %vm917, %v1804
        %1826 = vst.msk [vmem:[%s1823 + $0x10] sm:$0xff] %vm917, %v1811
        %1827 = vst.msk [vmem:[%s1823 + $0x18] sm:$0xff] %vm917, %v1818
        %1828 = vset.pattern.permute.xlu0 1
        %1829 = vperm.xlu0 %1828, %v1280
        %v1830 = vpop.permute.xlu0 %1829
        %1831 = vset.pattern.permute.xlu0 1
        %1832 = vperm.xlu0 %1831, %v1282
        %v1833 = vpop.permute.xlu0 %1832
        %1834 = vset.pattern.permute.xlu0 1
        %1835 = vperm.xlu0 %1834, %v1284
        %v1836 = vpop.permute.xlu0 %1835
        %1837 = vset.pattern.permute.xlu0 1
        %1838 = vperm.xlu0 %1837, %v1286
        %v1839 = vpop.permute.xlu0 %1838
        %1840 = vset.pattern.permute.xlu0 1
        %1841 = vperm.xlu0 %1840, %v1288
        %v1842 = vpop.permute.xlu0 %1841
        %1843 = vset.pattern.permute.xlu0 1
        %1844 = vperm.xlu0 %1843, %v1290
        %v1845 = vpop.permute.xlu0 %1844
        %1846 = vset.pattern.permute.xlu0 1
        %1847 = vperm.xlu0 %1846, %v1292
        %v1848 = vpop.permute.xlu0 %1847
        %1849 = vset.pattern.permute.xlu0 1
        %1850 = vperm.xlu0 %1849, %v1294
        %v1851 = vpop.permute.xlu0 %1850
        %1852 = vset.pattern.permute.xlu0 1
        %1853 = vperm.xlu0 %1852, %v1392
        %v1854 = vpop.permute.xlu0 %1853
        %1855 = vset.pattern.permute.xlu0 1
        %1856 = vperm.xlu0 %1855, %v1394
        %v1857 = vpop.permute.xlu0 %1856
        %1858 = vset.pattern.permute.xlu0 1
        %1859 = vperm.xlu0 %1858, %v1396
        %v1860 = vpop.permute.xlu0 %1859
        %1861 = vset.pattern.permute.xlu0 1
        %1862 = vperm.xlu0 %1861, %v1398
        %v1863 = vpop.permute.xlu0 %1862
        %1864 = vset.pattern.permute.xlu0 1
        %1865 = vperm.xlu0 %1864, %v1400
        %v1866 = vpop.permute.xlu0 %1865
        %1867 = vset.pattern.permute.xlu0 1
        %1868 = vperm.xlu0 %1867, %v1402
        %v1869 = vpop.permute.xlu0 %1868
        %1870 = vset.pattern.permute.xlu0 1
        %1871 = vperm.xlu0 %1870, %v1404
        %v1872 = vpop.permute.xlu0 %1871
        %1873 = vset.pattern.permute.xlu0 1
        %1874 = vperm.xlu0 %1873, %v1406
        %v1875 = vpop.permute.xlu0 %1874
        %1876 = vset.pattern.permute.xlu0 1
        %1877 = vperm.xlu0 %1876, %v1504
        %v1878 = vpop.permute.xlu0 %1877
        %1879 = vset.pattern.permute.xlu0 1
        %1880 = vperm.xlu0 %1879, %v1506
        %v1881 = vpop.permute.xlu0 %1880
        %1882 = vset.pattern.permute.xlu0 1
        %1883 = vperm.xlu0 %1882, %v1508
        %v1884 = vpop.permute.xlu0 %1883
        %1885 = vset.pattern.permute.xlu0 1
        %1886 = vperm.xlu0 %1885, %v1510
        %v1887 = vpop.permute.xlu0 %1886
        %1888 = vset.pattern.permute.xlu0 1
        %1889 = vperm.xlu0 %1888, %v1512
        %v1890 = vpop.permute.xlu0 %1889
        %1891 = vset.pattern.permute.xlu0 1
        %1892 = vperm.xlu0 %1891, %v1514
        %v1893 = vpop.permute.xlu0 %1892
        %1894 = vset.pattern.permute.xlu0 1
        %1895 = vperm.xlu0 %1894, %v1516
        %v1896 = vpop.permute.xlu0 %1895
        %1897 = vset.pattern.permute.xlu0 1
        %1898 = vperm.xlu0 %1897, %v1518
        %v1899 = vpop.permute.xlu0 %1898
        %1900 = vset.pattern.permute.xlu0 1
        %1901 = vperm.xlu0 %1900, %v1616
        %v1902 = vpop.permute.xlu0 %1901
        %1903 = vset.pattern.permute.xlu0 1
        %1904 = vperm.xlu0 %1903, %v1618
        %v1905 = vpop.permute.xlu0 %1904
        %1906 = vset.pattern.permute.xlu0 1
        %1907 = vperm.xlu0 %1906, %v1620
        %v1908 = vpop.permute.xlu0 %1907
        %1909 = vset.pattern.permute.xlu0 1
        %1910 = vperm.xlu0 %1909, %v1622
        %v1911 = vpop.permute.xlu0 %1910
        %1912 = vset.pattern.permute.xlu0 1
        %1913 = vperm.xlu0 %1912, %v1624
        %v1914 = vpop.permute.xlu0 %1913
        %1915 = vset.pattern.permute.xlu0 1
        %1916 = vperm.xlu0 %1915, %v1626
        %v1917 = vpop.permute.xlu0 %1916
        %1918 = vset.pattern.permute.xlu0 1
        %1919 = vperm.xlu0 %1918, %v1628
        %v1920 = vpop.permute.xlu0 %1919
        %1921 = vset.pattern.permute.xlu0 1
        %1922 = vperm.xlu0 %1921, %v1630
        %v1923 = vpop.permute.xlu0 %1922
        %v1924 = vperm.slane %v1830, %v845
        %v1925 = vperm.slane %v1833, %v845
        %v1926 = vperm.slane %v1836, %v845
        %v1927 = vperm.slane %v1839, %v845
        %v1928 = vperm.slane %v1842, %v845
        %v1929 = vperm.slane %v1845, %v845
        %v1930 = vperm.slane %v1848, %v845
        %v1931 = vperm.slane %v1851, %v845
        %v1932 = vperm.slane %v1854, %v845
        %v1933 = vperm.slane %v1857, %v845
        %v1934 = vperm.slane %v1860, %v845
        %v1935 = vperm.slane %v1863, %v845
        %v1936 = vperm.slane %v1866, %v845
        %v1937 = vperm.slane %v1869, %v845
        %v1938 = vperm.slane %v1872, %v845
        %v1939 = vperm.slane %v1875, %v845
        %v1940 = vperm.slane %v1878, %v845
        %v1941 = vperm.slane %v1881, %v845
        %v1942 = vperm.slane %v1884, %v845
        %v1943 = vperm.slane %v1887, %v845
        %v1944 = vperm.slane %v1890, %v845
        %v1945 = vperm.slane %v1893, %v845
        %v1946 = vperm.slane %v1896, %v845
        %v1947 = vperm.slane %v1899, %v845
        %v1948 = vperm.slane %v1902, %v845
        %v1949 = vperm.slane %v1905, %v845
        %v1950 = vperm.slane %v1908, %v845
        %v1951 = vperm.slane %v1911, %v845
        %v1952 = vperm.slane %v1914, %v845
        %v1953 = vperm.slane %v1917, %v845
        %v1954 = vperm.slane %v1920, %v845
        %v1955 = vperm.slane %v1923, %v845
        %v1956 = vsel %vm878, %v1925, %v1924
        %v1957 = vsel %vm880, %v1926, %v1956
        %v1958 = vsel %vm882, %v1927, %v1957
        %v1959 = vsel %vm884, %v1928, %v1958
        %v1960 = vsel %vm886, %v1929, %v1959
        %v1961 = vsel %vm888, %v1930, %v1960
        %v1962 = vsel %vm890, %v1931, %v1961
        %v1963 = vsel %vm878, %v1933, %v1932
        %v1964 = vsel %vm880, %v1934, %v1963
        %v1965 = vsel %vm882, %v1935, %v1964
        %v1966 = vsel %vm884, %v1936, %v1965
        %v1967 = vsel %vm886, %v1937, %v1966
        %v1968 = vsel %vm888, %v1938, %v1967
        %v1969 = vsel %vm890, %v1939, %v1968
        %v1970 = vsel %vm878, %v1941, %v1940
        %v1971 = vsel %vm880, %v1942, %v1970
        %v1972 = vsel %vm882, %v1943, %v1971
        %v1973 = vsel %vm884, %v1944, %v1972
        %v1974 = vsel %vm886, %v1945, %v1973
        %v1975 = vsel %vm888, %v1946, %v1974
        %v1976 = vsel %vm890, %v1947, %v1975
        %v1977 = vsel %vm878, %v1949, %v1948
        %v1978 = vsel %vm880, %v1950, %v1977
        %v1979 = vsel %vm882, %v1951, %v1978
        %v1980 = vsel %vm884, %v1952, %v1979
        %v1981 = vsel %vm886, %v1953, %v1980
        %v1982 = vsel %vm888, %v1954, %v1981
        %v1983 = vsel %vm890, %v1955, %v1982
        %s1988 = scalar_lea.vmem %s168, 96 [#allocation5]
        %1989 = vst.msk [vmem:[%s1988] sm:$0xff] %vm917, %v1962
        %1990 = vst.msk [vmem:[%s1988 + $0x8] sm:$0xff] %vm917, %v1969
        %1991 = vst.msk [vmem:[%s1988 + $0x10] sm:$0xff] %vm917, %v1976
        %1992 = vst.msk [vmem:[%s1988 + $0x18] sm:$0xff] %vm917, %v1983
        %s1993 = sand.u32 %s79, 1
        %s1994 = scalar_lea.sflag [#allocation4], %s1993
        %s1995 = sand.u32 %s79, 1
        %s1996 = smul.addr %s1995, 128
        %s1997 = scalar_lea.vmem [#allocation5], %s1996
        // Predicated region
        $region29: #{tpu_custom_call.1} parent=23 // pred_check
          %p1998 = pneg %p89
        $region30: #{tpu_custom_call.1} parent=23 // pred_check_branch
          %2000 = sbr.rel (%p1998) target = $region32
        $region31: #{tpu_custom_call.1} parent=23 // pred_region
          %s2001 = smul.u32 4, %s24
          %2003 = vsyncadd %s1994, 0
          %s2004 = sadd.s32 %s25, %s2001
          %s2005 = smul.addr %s23, 16
          %s2006 = sadd.s32 %s2004, %s2005
          %s2007 = smul.addr %s2006, 8
          %s2008 = scalar_lea.hbm %s1, %s2007
          %s2009 = sshll.u32 %s1997, 4
          %s2010 = int_to_ptr.vmem [resolvable:$true] %s2009
          %s2011 = sshll.u32 %s2008, 4
          %s2012 = int_to_ptr.hbm [resolvable:$true] %s2011
          %2017 = dma.vmem_to_hbm [thread:$0]  %s2010, 2048, %s2012, %s1994, 128, 128, 8
        $region32: #{tpu_custom_call.1} parent=23 // pred_fallthru
          _
      $region24: #{tpu_custom_call.1} parent=5 // pred_fallthru
        _
      %p2018 = scmp.le.s32.totalorder 2, %s13
      // Predicated region
      $region33: #{tpu_custom_call.1} parent=5 // pred_check
        %p2019 = pneg %p2018
      $region34: #{tpu_custom_call.1} parent=5 // pred_check_branch
        %2021 = sbr.rel (%p2019) target = $region36
      $region35: #{tpu_custom_call.1} parent=5 // pred_region
        %s2022 = ssub.s32 %s13, 2
        // Predicated region
        $region37: #{tpu_custom_call.1} parent=35 // pred_check
          %p2023 = pneg %p95
        $region38: #{tpu_custom_call.1} parent=35 // pred_check_branch
          %2025 = sbr.rel (%p2023) target = $region40
        $region39: #{tpu_custom_call.1} parent=35 // pred_region
          %s2026 = sand.u32 %s80, 1
          %s2027 = scalar_lea.sflag [#allocation4], %s2026
          %s2028 = sand.u32 %s80, 1
          %s2029 = smul.addr %s2028, 128
          %s2030 = scalar_lea.vmem [#allocation5], %s2029
          %2032 = dma.done %s2027, 2048
        $region40: #{tpu_custom_call.1} parent=35 // pred_fallthru
          _
      $region36: #{tpu_custom_call.1} parent=5 // pred_fallthru
        _
    $region6: #{tpu_custom_call.1} parent=1 // loop_footer
      %s17 = sadd.s32 1, %s13
    $region7: #{tpu_custom_call.1} parent=1 // loop_footer_branch
      %12 = sbr.rel target = $region3
    $region8: #{tpu_custom_call.1} parent=1 // loop_exit
      _
    %2033 = vsyncpa [#allocation3], 1
    %s2034 = scalar_lea.sflag [#allocation3], 1
    %2035 = vsyncpa %s2034, 1
    %2036 = vsyncpa [#allocation4], 1
    %s2037 = scalar_lea.sflag [#allocation4], 1
    %2038 = vsyncpa %s2037, 1

</llo_original>
